<compile_context>
chip_gen: v7x
topology: tpu7x:2x2x1
jax: 0.10.0
libtpu: 0.0.40
codegen_flags: <defaults>
</compile_context>

<pallas_src>
import functools

import jax
import jax.numpy as jnp
from jax import lax
from jax.experimental import pallas as pl
from jax.experimental.pallas import tpu as pltpu


# ----------------------------------------------------------------------------
# Trace-time constant builders (wrapper side, plain JAX, tiny).
# ----------------------------------------------------------------------------
def _make_upsample_matrix(size: int) -> jnp.ndarray:
    """(2*size, size) matrix reproducing PyTorch bilinear, align_corners=False."""
    out = 2 * size
    i = jnp.arange(out, dtype=jnp.float32)
    src = jnp.maximum((i + 0.5) / 2.0 - 0.5, 0.0)          # clamp low, like PyTorch
    i0 = jnp.clip(jnp.floor(src).astype(jnp.int32), 0, size - 1)
    i1 = jnp.minimum(i0 + 1, size - 1)
    f = src - i0.astype(jnp.float32)
    m = jnp.zeros((out, size), jnp.float32)
    m = m.at[jnp.arange(out), i0].add(1.0 - f)
    m = m.at[jnp.arange(out), i1].add(f)
    return m


def _make_banded_conv_weights(w3: jnp.ndarray, width: int) -> jnp.ndarray:
    """3x3 conv (pad=1) along W folded into banded matrices.

    w3: (3, 3, Cin, Cout) HWIO  ->  (3, width*Cin, width*Cout) with
    band[kh][(w+kw-1)*Cin+ci, w*Cout+co] = w3[kh,kw,ci,co]  (W-boundary taps
    dropped == zero padding in W).
    """
    kh_n, kw_n, cin, cout = w3.shape
    bands = []
    for kh in range(kh_n):
        acc = jnp.zeros((width * cin, width * cout), w3.dtype)
        for kw in range(kw_n):
            shift = jnp.eye(width, k=-(kw - 1), dtype=w3.dtype)  # P[w+kw-1, w] = 1
            acc = acc + jnp.kron(shift, w3[kh, kw])
        bands.append(acc)
    return jnp.stack(bands, axis=0)


# ----------------------------------------------------------------------------
# Fused kernel: one grid step per batch element; everything stays in VMEM.
# ----------------------------------------------------------------------------
def _fused_kernel(x_ref, crop_ref, uh_ref, uwc_ref,
                  wub_ref, bu_ref, w1a_ref, w1b_ref, b1_ref, w2_ref, b2_ref,
                  o_ref,
                  a_pad, u_pad, c_pad, o1_pad,
                  *, H, W, Cin, Cout):
    f32 = jnp.float32
    H2, W2 = 2 * H, 2 * W
    zeros_in = jnp.zeros((1, W2 * Cin), f32)
    zeros_out = jnp.zeros((1, W2 * Cout), f32)

    # --- bilinear 2x upsample: two clean (M,K)x(K,N) dots -------------------
    x = x_ref[0]                                                  # (H, W*Cin)
    t = jnp.dot(uh_ref[...], x, preferred_element_type=f32)       # (2H, W*Cin)
    up = jnp.dot(t, uwc_ref[...], preferred_element_type=f32)     # (2H, 2W*Cin)

    a_pad[0:1, :] = zeros_in                                      # H padding rows
    a_pad[H2 + 1:H2 + 2, :] = zeros_in
    a_pad[1:H2 + 1, :] = up

    # --- up conv (3x3, pad=1, no activation): 3 banded matmuls --------------
    acc = jnp.broadcast_to(bu_ref[...], (H2, W2 * Cout)).astype(f32)
    for kh in range(3):
        acc = acc + jnp.dot(a_pad[kh:kh + H2, :], wub_ref[kh],
                            preferred_element_type=f32)
    u_pad[0:1, :] = zeros_out
    u_pad[H2 + 1:H2 + 2, :] = zeros_out
    u_pad[1:H2 + 1, :] = acc

    # --- cropped bridge (already lane-flattened), H-padded in VMEM ----------
    c_pad[0:1, :] = zeros_out
    c_pad[H2 + 1:H2 + 2, :] = zeros_out
    c_pad[1:H2 + 1, :] = crop_ref[0]

    # --- conv1 over concat([up, crop]) == two weight streams + LeakyReLU ----
    acc = jnp.broadcast_to(b1_ref[...], (H2, W2 * Cout)).astype(f32)
    for kh in range(3):
        acc = acc + jnp.dot(u_pad[kh:kh + H2, :], w1a_ref[kh],
                            preferred_element_type=f32)
        acc = acc + jnp.dot(c_pad[kh:kh + H2, :], w1b_ref[kh],
                            preferred_element_type=f32)
    acc = jnp.maximum(acc, 0.1 * acc)                              # LeakyReLU(0.1)
    o1_pad[0:1, :] = zeros_out
    o1_pad[H2 + 1:H2 + 2, :] = zeros_out
    o1_pad[1:H2 + 1, :] = acc

    # --- conv2 + LeakyReLU ---------------------------------------------------
    acc = jnp.broadcast_to(b2_ref[...], (H2, W2 * Cout)).astype(f32)
    for kh in range(3):
        acc = acc + jnp.dot(o1_pad[kh:kh + H2, :], w2_ref[kh],
                            preferred_element_type=f32)
    o_ref[0] = jnp.maximum(acc, 0.1 * acc).astype(o_ref.dtype)


# ----------------------------------------------------------------------------
# UNetUpBlock forward (params are a dict of deterministic weights, HWIO).
# ----------------------------------------------------------------------------
def unet_up_block_forward(params, x, bridge):
    # x: (N, H, W, in_size), bridge: (N, Hb, Wb, out_size)  ->  (N, 2H, 2W, out_size)
    N, H, W, Cin = x.shape
    Cout = params["up_w"].shape[-1]
    H2, W2 = 2 * H, 2 * W

    # -- weight / constant preparation (tiny, done per call outside kernel) --
    uh = _make_upsample_matrix(H)                                  # (2H, H)
    uw = _make_upsample_matrix(W)                                  # (2W, W)
    uwc = jnp.kron(uw.T, jnp.eye(Cin, dtype=jnp.float32))          # (W*Cin, 2W*Cin)

    wub = _make_banded_conv_weights(params["up_w"], W2)            # (3, 2W*Cin, 2W*Cout)
    w1a = _make_banded_conv_weights(params["c1_w"][:, :, :Cout, :], W2)   # up half
    w1b = _make_banded_conv_weights(params["c1_w"][:, :, Cout:, :], W2)   # crop half
    w2 = _make_banded_conv_weights(params["c2_w"], W2)
    bu = jnp.tile(params["up_b"], W2).reshape(1, W2 * Cout)
    b1 = jnp.tile(params["c1_b"], W2).reshape(1, W2 * Cout)
    b2 = jnp.tile(params["c2_b"], W2).reshape(1, W2 * Cout)

    # -- lane-flatten activations; center-crop the bridge (cheap glue) -------
    x2 = x.reshape(N, H, W * Cin)
    _, Hb, Wb, Cb = bridge.shape
    dy = (Hb - H2) // 2
    dx = (Wb - W2) // 2
    crop2 = bridge[:, dy:dy + H2, dx:dx + W2, :].reshape(N, H2, W2 * Cb)

    kern = functools.partial(_fused_kernel, H=H, W=W, Cin=Cin, Cout=Cout)
    out = pl.pallas_call(
        kern,
        out_shape=jax.ShapeDtypeStruct((N, H2, W2 * Cout), jnp.float32),
        grid_spec=pltpu.PrefetchScalarGridSpec(
            num_scalar_prefetch=0,
            grid=(N,),
            in_specs=[
                pl.BlockSpec((1, H, W * Cin), lambda n: (n, 0, 0)),
                pl.BlockSpec((1, H2, W2 * Cout), lambda n: (n, 0, 0)),
                pl.BlockSpec((H2, H), lambda n: (0, 0)),
                pl.BlockSpec((W * Cin, W2 * Cin), lambda n: (0, 0)),
                pl.BlockSpec((3, W2 * Cin, W2 * Cout), lambda n: (0, 0, 0)),
                pl.BlockSpec((1, W2 * Cout), lambda n: (0, 0)),
                pl.BlockSpec((3, W2 * Cout, W2 * Cout), lambda n: (0, 0, 0)),
                pl.BlockSpec((3, W2 * Cout, W2 * Cout), lambda n: (0, 0, 0)),
                pl.BlockSpec((1, W2 * Cout), lambda n: (0, 0)),
                pl.BlockSpec((3, W2 * Cout, W2 * Cout), lambda n: (0, 0, 0)),
                pl.BlockSpec((1, W2 * Cout), lambda n: (0, 0)),
            ],
            out_specs=pl.BlockSpec((1, H2, W2 * Cout), lambda n: (n, 0, 0)),
            scratch_shapes=[
                pltpu.VMEM((H2 + 2, W2 * Cin), jnp.float32),    # padded upsample
                pltpu.VMEM((H2 + 2, W2 * Cout), jnp.float32),   # padded up-conv out
                pltpu.VMEM((H2 + 2, W2 * Cout), jnp.float32),   # padded crop
                pltpu.VMEM((H2 + 2, W2 * Cout), jnp.float32),   # padded conv1 out
            ],
        ),
        compiler_params=pltpu.CompilerParams(dimension_semantics=("parallel",)),
    )(x2, crop2, uh, uwc, wub, bu, w1a, w1b, b1, w2, b2)

    return out.reshape(N, H2, W2, Cout)


# ----------------------------------------------------------------------------
# Pure-JAX reference (for numerical validation of the fused kernel).
# ----------------------------------------------------------------------------
def _ref_conv3x3(x, w, b, negative_slope=None):
    y = lax.conv_general_dilated(x, w, window_strides=(1, 1), padding="SAME",
                                 dimension_numbers=("NHWC", "HWIO", "NHWC"))
    y = y + b
    if negative_slope is not None:
        y = jnp.where(y > 0, y, negative_slope * y)
    return y


def _ref_center_crop(layer, target_hw):
    _, Hh, Ww, _ = layer.shape
    th, tw = target_hw
    dy = (Hh - th) // 2
    dx = (Ww - tw) // 2
    return layer[:, dy:dy + th, dx:dx + tw, :]


def _ref_forward(params, x, bridge):
    N, H, W, C = x.shape
    uh = _make_upsample_matrix(H)
    uw = _make_upsample_matrix(W)
    up = jnp.einsum("ph,nhwc->npwc", uh, x)
    up = jnp.einsum("qw,npwc->npqc", uw, up)
    up = _ref_conv3x3(up, params["up_w"], params["up_b"])
    crop = _ref_center_crop(bridge, up.shape[1:3])
    out = jnp.concatenate([up, crop], axis=-1)
    out = _ref_conv3x3(out, params["c1_w"], params["c1_b"], 0.1)
    out = _ref_conv3x3(out, params["c2_w"], params["c2_b"], 0.1)
    return out


# ----------------------------------------------------------------------------
if __name__ == "__main__":
    # Small shapes: in_size = 8, out_size = 4, padding = 1.
    N, in_size, out_size = 2, 8, 4
    H = W = 8                      # x spatial; upsampled to 16x16
    Hb = Wb = 18                   # bridge spatial (center-cropped to 16x16)

    key = jax.random.PRNGKey(0)
    k = jax.random.split(key, 8)

    x = jax.random.normal(k[0], (N, H, W, in_size), jnp.float32)
    bridge = jax.random.normal(k[1], (N, Hb, Wb, out_size), jnp.float32)

    params = {
        # up conv: Conv2d(in_size -> out_size, k=3, pad=1); weights in HWIO layout
        "up_w": 0.1 * jax.random.normal(k[2], (3, 3, in_size, out_size), jnp.float32),
        "up_b": 0.1 * jax.random.normal(k[3], (out_size,), jnp.float32),
        # conv_block conv1: Conv2d(in_size -> out_size)
        "c1_w": 0.1 * jax.random.normal(k[4], (3, 3, in_size, out_size), jnp.float32),
        "c1_b": 0.1 * jax.random.normal(k[5], (out_size,), jnp.float32),
        # conv_block conv2: Conv2d(out_size -> out_size)
        "c2_w": 0.1 * jax.random.normal(k[6], (3, 3, out_size, out_size), jnp.float32),
        "c2_b": 0.1 * jax.random.normal(k[7], (out_size,), jnp.float32),
    }

    out = jax.jit(unet_up_block_forward)(params, x, bridge)
    out = jax.block_until_ready(out)

    ref = _ref_forward(params, x, bridge)
    assert out.shape == (N, 2 * H, 2 * W, out_size), out.shape
    assert jnp.allclose(out, ref, atol=1e-4, rtol=1e-4), \
        float(jnp.max(jnp.abs(out - ref)))

    print("KERNEL_OK")
</pallas_src>

<mosaic_0001>
module attributes {stable_mosaic.version = 11 : i64} {
  func.func private @main(%arg0: i32) attributes {dimension_semantics = [#tpu.dimension_semantics<core_parallel>], iteration_bounds = array<i64: 2>, tpu.core_type = #tpu.core_type<sc_scalar_subcore>, window_params = []} {
    return
  }
}

module attributes {stable_mosaic.version = 11 : i64} {
  func.func private @main(%arg0: i32) attributes {dimension_semantics = [#tpu.dimension_semantics<core_parallel>], iteration_bounds = array<i64: 2>, tpu.core_type = #tpu.core_type<sc_scalar_subcore>, window_params = []} {
    return
  }
}

module attributes {stable_mosaic.version = 11 : i64} {
  func.func @_fused_kernel(%arg0: i32, %arg1: memref<1x8x64xf32, #tpu.memory_space<vmem>>, %arg2: memref<1x16x64xf32, #tpu.memory_space<vmem>>, %arg3: memref<16x8xf32, #tpu.memory_space<vmem>>, %arg4: memref<64x128xf32, #tpu.memory_space<vmem>>, %arg5: memref<3x128x64xf32, #tpu.memory_space<vmem>>, %arg6: memref<1x64xf32, #tpu.memory_space<vmem>>, %arg7: memref<3x64x64xf32, #tpu.memory_space<vmem>>, %arg8: memref<3x64x64xf32, #tpu.memory_space<vmem>>, %arg9: memref<1x64xf32, #tpu.memory_space<vmem>>, %arg10: memref<3x64x64xf32, #tpu.memory_space<vmem>>, %arg11: memref<1x64xf32, #tpu.memory_space<vmem>>, %arg12: memref<1x16x64xf32, #tpu.memory_space<vmem>>, %arg13: memref<18x128xf32, #tpu.memory_space<vmem>>, %arg14: memref<18x64xf32, #tpu.memory_space<vmem>>, %arg15: memref<18x64xf32, #tpu.memory_space<vmem>>, %arg16: memref<18x64xf32, #tpu.memory_space<vmem>>) attributes {dimension_semantics = [#tpu.dimension_semantics<parallel>], iteration_bounds = array<i64: 2>, scalar_prefetch = 0 : i64, scratch_operands = 4 : i64, tpu.core_type = #tpu.core_type<tc>, window_params = [{transform_indices = @transform_0, window_bounds = array<i64: 1, 8, 64>}, {transform_indices = @transform_1, window_bounds = array<i64: 1, 16, 64>}, {pipeline_mode = #tpu.pipeline_mode<synchronous>, transform_indices = @transform_2, window_bounds = array<i64: 16, 8>}, {pipeline_mode = #tpu.pipeline_mode<synchronous>, transform_indices = @transform_3, window_bounds = array<i64: 64, 128>}, {pipeline_mode = #tpu.pipeline_mode<synchronous>, transform_indices = @transform_4, window_bounds = array<i64: 3, 128, 64>}, {pipeline_mode = #tpu.pipeline_mode<synchronous>, transform_indices = @transform_5, window_bounds = array<i64: 1, 64>}, {pipeline_mode = #tpu.pipeline_mode<synchronous>, transform_indices = @transform_6, window_bounds = array<i64: 3, 64, 64>}, {pipeline_mode = #tpu.pipeline_mode<synchronous>, transform_indices = @transform_7, window_bounds = array<i64: 3, 64, 64>}, {pipeline_mode = #tpu.pipeline_mode<synchronous>, transform_indices = @transform_8, window_bounds = array<i64: 1, 64>}, {pipeline_mode = #tpu.pipeline_mode<synchronous>, transform_indices = @transform_9, window_bounds = array<i64: 3, 64, 64>}, {pipeline_mode = #tpu.pipeline_mode<synchronous>, transform_indices = @transform_10, window_bounds = array<i64: 1, 64>}, {transform_indices = @transform_11, window_bounds = array<i64: 1, 16, 64>}]} {
    %cst = arith.constant 0.000000e+00 : f32
    %0 = vector.broadcast %cst : f32 to vector<1x128xf32>
    %cst_0 = arith.constant 0.000000e+00 : f32
    %1 = vector.broadcast %cst_0 : f32 to vector<1x64xf32>
    %c0 = arith.constant 0 : index
    %c0_1 = arith.constant 0 : index
    %c0_2 = arith.constant 0 : index
    %2 = vector.load %arg1[%c0, %c0_1, %c0_2] : memref<1x8x64xf32, #tpu.memory_space<vmem>>, vector<1x8x64xf32>
    %3 = vector.shape_cast %2 : vector<1x8x64xf32> to vector<8x64xf32>
    %c0_3 = arith.constant 0 : index
    %c0_4 = arith.constant 0 : index
    %4 = vector.load %arg3[%c0_3, %c0_4] : memref<16x8xf32, #tpu.memory_space<vmem>>, vector<16x8xf32>
    %cst_5 = arith.constant dense<0.000000e+00> : vector<16x64xf32>
    %5 = tpu.matmul %4, %3, %cst_5 {dimension_numbers = #tpu.dot_dimension_numbers<[1], [0], [0], [1], [0, 0, 1, 1], [], []>} : vector<16x8xf32>, vector<8x64xf32>, vector<16x64xf32> -> vector<16x64xf32>
    %c0_6 = arith.constant 0 : index
    %c0_7 = arith.constant 0 : index
    %6 = vector.load %arg4[%c0_6, %c0_7] : memref<64x128xf32, #tpu.memory_space<vmem>>, vector<64x128xf32>
    %cst_8 = arith.constant dense<0.000000e+00> : vector<16x128xf32>
    %7 = tpu.matmul %5, %6, %cst_8 {dimension_numbers = #tpu.dot_dimension_numbers<[1], [0], [0], [1], [0, 0, 1, 1], [], []>} : vector<16x64xf32>, vector<64x128xf32>, vector<16x128xf32> -> vector<16x128xf32>
    %c0_9 = arith.constant 0 : index
    %c0_10 = arith.constant 0 : index
    %8 = vector.load %arg13[%c0_9, %c0_10] : memref<18x128xf32, #tpu.memory_space<vmem>>, vector<1x128xf32>
    tpu.vector_store %arg13[%c0_9, %c0_10], %0 {strides = array<i32>} : memref<18x128xf32, #tpu.memory_space<vmem>>, vector<1x128xf32>,
    %c17 = arith.constant 17 : index
    %c0_11 = arith.constant 0 : index
    %9 = vector.load %arg13[%c17, %c0_11] : memref<18x128xf32, #tpu.memory_space<vmem>>, vector<1x128xf32>
    tpu.vector_store %arg13[%c17, %c0_11], %0 {strides = array<i32>} : memref<18x128xf32, #tpu.memory_space<vmem>>, vector<1x128xf32>,
    %c1 = arith.constant 1 : index
    %c0_12 = arith.constant 0 : index
    %10 = vector.load %arg13[%c1, %c0_12] : memref<18x128xf32, #tpu.memory_space<vmem>>, vector<16x128xf32>
    tpu.vector_store %arg13[%c1, %c0_12], %7 {strides = array<i32>} : memref<18x128xf32, #tpu.memory_space<vmem>>, vector<16x128xf32>,
    %c0_13 = arith.constant 0 : index
    %c0_14 = arith.constant 0 : index
    %11 = vector.load %arg6[%c0_13, %c0_14] : memref<1x64xf32, #tpu.memory_space<vmem>>, vector<1x64xf32>
    %12 = vector.shape_cast %11 : vector<1x64xf32> to vector<1x64xf32>
    %13 = vector.broadcast %12 : vector<1x64xf32> to vector<16x64xf32>
    %c0_15 = arith.constant 0 : index
    %c0_16 = arith.constant 0 : index
    %14 = vector.load %arg13[%c0_15, %c0_16] : memref<18x128xf32, #tpu.memory_space<vmem>>, vector<16x128xf32>
    %c0_17 = arith.constant 0 : index
    %c0_18 = arith.constant 0 : index
    %c0_19 = arith.constant 0 : index
    %15 = vector.load %arg5[%c0_17, %c0_18, %c0_19] : memref<3x128x64xf32, #tpu.memory_space<vmem>>, vector<1x128x64xf32>
    %16 = vector.shape_cast %15 : vector<1x128x64xf32> to vector<128x64xf32>
    %cst_20 = arith.constant dense<0.000000e+00> : vector<16x64xf32>
    %17 = tpu.matmul %14, %16, %cst_20 {dimension_numbers = #tpu.dot_dimension_numbers<[1], [0], [0], [1], [0, 0, 1, 1], [], []>} : vector<16x128xf32>, vector<128x64xf32>, vector<16x64xf32> -> vector<16x64xf32>
    %18 = arith.addf %13, %17 : vector<16x64xf32>
    %c1_21 = arith.constant 1 : index
    %c0_22 = arith.constant 0 : index
    %19 = vector.load %arg13[%c1_21, %c0_22] : memref<18x128xf32, #tpu.memory_space<vmem>>, vector<16x128xf32>
    %c1_23 = arith.constant 1 : index
    %c0_24 = arith.constant 0 : index
    %c0_25 = arith.constant 0 : index
    %20 = vector.load %arg5[%c1_23, %c0_24, %c0_25] : memref<3x128x64xf32, #tpu.memory_space<vmem>>, vector<1x128x64xf32>
    %21 = vector.shape_cast %20 : vector<1x128x64xf32> to vector<128x64xf32>
    %cst_26 = arith.constant dense<0.000000e+00> : vector<16x64xf32>
    %22 = tpu.matmul %19, %21, %cst_26 {dimension_numbers = #tpu.dot_dimension_numbers<[1], [0], [0], [1], [0, 0, 1, 1], [], []>} : vector<16x128xf32>, vector<128x64xf32>, vector<16x64xf32> -> vector<16x64xf32>
    %23 = arith.addf %18, %22 : vector<16x64xf32>
    %c2 = arith.constant 2 : index
    %c0_27 = arith.constant 0 : index
    %24 = vector.load %arg13[%c2, %c0_27] : memref<18x128xf32, #tpu.memory_space<vmem>>, vector<16x128xf32>
    %c2_28 = arith.constant 2 : index
    %c0_29 = arith.constant 0 : index
    %c0_30 = arith.constant 0 : index
    %25 = vector.load %arg5[%c2_28, %c0_29, %c0_30] : memref<3x128x64xf32, #tpu.memory_space<vmem>>, vector<1x128x64xf32>
    %26 = vector.shape_cast %25 : vector<1x128x64xf32> to vector<128x64xf32>
    %cst_31 = arith.constant dense<0.000000e+00> : vector<16x64xf32>
    %27 = tpu.matmul %24, %26, %cst_31 {dimension_numbers = #tpu.dot_dimension_numbers<[1], [0], [0], [1], [0, 0, 1, 1], [], []>} : vector<16x128xf32>, vector<128x64xf32>, vector<16x64xf32> -> vector<16x64xf32>
    %28 = arith.addf %23, %27 : vector<16x64xf32>
    %c0_32 = arith.constant 0 : index
    %c0_33 = arith.constant 0 : index
    %29 = vector.load %arg14[%c0_32, %c0_33] : memref<18x64xf32, #tpu.memory_space<vmem>>, vector<1x64xf32>
    tpu.vector_store %arg14[%c0_32, %c0_33], %1 {strides = array<i32>} : memref<18x64xf32, #tpu.memory_space<vmem>>, vector<1x64xf32>,
    %c17_34 = arith.constant 17 : index
    %c0_35 = arith.constant 0 : index
    %30 = vector.load %arg14[%c17_34, %c0_35] : memref<18x64xf32, #tpu.memory_space<vmem>>, vector<1x64xf32>
    tpu.vector_store %arg14[%c17_34, %c0_35], %1 {strides = array<i32>} : memref<18x64xf32, #tpu.memory_space<vmem>>, vector<1x64xf32>,
    %c1_36 = arith.constant 1 : index
    %c0_37 = arith.constant 0 : index
    %31 = vector.load %arg14[%c1_36, %c0_37] : memref<18x64xf32, #tpu.memory_space<vmem>>, vector<16x64xf32>
    tpu.vector_store %arg14[%c1_36, %c0_37], %28 {strides = array<i32>} : memref<18x64xf32, #tpu.memory_space<vmem>>, vector<16x64xf32>,
    %c0_38 = arith.constant 0 : index
    %c0_39 = arith.constant 0 : index
    %32 = vector.load %arg15[%c0_38, %c0_39] : memref<18x64xf32, #tpu.memory_space<vmem>>, vector<1x64xf32>
    tpu.vector_store %arg15[%c0_38, %c0_39], %1 {strides = array<i32>} : memref<18x64xf32, #tpu.memory_space<vmem>>, vector<1x64xf32>,
    %c17_40 = arith.constant 17 : index
    %c0_41 = arith.constant 0 : index
    %33 = vector.load %arg15[%c17_40, %c0_41] : memref<18x64xf32, #tpu.memory_space<vmem>>, vector<1x64xf32>
    tpu.vector_store %arg15[%c17_40, %c0_41], %1 {strides = array<i32>} : memref<18x64xf32, #tpu.memory_space<vmem>>, vector<1x64xf32>,
    %c0_42 = arith.constant 0 : index
    %c0_43 = arith.constant 0 : index
    %c0_44 = arith.constant 0 : index
    %34 = vector.load %arg2[%c0_42, %c0_43, %c0_44] : memref<1x16x64xf32, #tpu.memory_space<vmem>>, vector<1x16x64xf32>
    %35 = vector.shape_cast %34 : vector<1x16x64xf32> to vector<16x64xf32>
    %c1_45 = arith.constant 1 : index
    %c0_46 = arith.constant 0 : index
    %36 = vector.load %arg15[%c1_45, %c0_46] : memref<18x64xf32, #tpu.memory_space<vmem>>, vector<16x64xf32>
    tpu.vector_store %arg15[%c1_45, %c0_46], %35 {strides = array<i32>} : memref<18x64xf32, #tpu.memory_space<vmem>>, vector<16x64xf32>,
    %c0_47 = arith.constant 0 : index
    %c0_48 = arith.constant 0 : index
    %37 = vector.load %arg9[%c0_47, %c0_48] : memref<1x64xf32, #tpu.memory_space<vmem>>, vector<1x64xf32>
    %38 = vector.shape_cast %37 : vector<1x64xf32> to vector<1x64xf32>
    %39 = vector.broadcast %38 : vector<1x64xf32> to vector<16x64xf32>
    %c0_49 = arith.constant 0 : index
    %c0_50 = arith.constant 0 : index
    %40 = vector.load %arg14[%c0_49, %c0_50] : memref<18x64xf32, #tpu.memory_space<vmem>>, vector<16x64xf32>
    %c0_51 = arith.constant 0 : index
    %c0_52 = arith.constant 0 : index
    %c0_53 = arith.constant 0 : index
    %41 = vector.load %arg7[%c0_51, %c0_52, %c0_53] : memref<3x64x64xf32, #tpu.memory_space<vmem>>, vector<1x64x64xf32>
    %42 = vector.shape_cast %41 : vector<1x64x64xf32> to vector<64x64xf32>
    %cst_54 = arith.constant dense<0.000000e+00> : vector<16x64xf32>
    %43 = tpu.matmul %40, %42, %cst_54 {dimension_numbers = #tpu.dot_dimension_numbers<[1], [0], [0], [1], [0, 0, 1, 1], [], []>} : vector<16x64xf32>, vector<64x64xf32>, vector<16x64xf32> -> vector<16x64xf32>
    %44 = arith.addf %39, %43 : vector<16x64xf32>
    %c0_55 = arith.constant 0 : index
    %c0_56 = arith.constant 0 : index
    %45 = vector.load %arg15[%c0_55, %c0_56] : memref<18x64xf32, #tpu.memory_space<vmem>>, vector<16x64xf32>
    %c0_57 = arith.constant 0 : index
    %c0_58 = arith.constant 0 : index
    %c0_59 = arith.constant 0 : index
    %46 = vector.load %arg8[%c0_57, %c0_58, %c0_59] : memref<3x64x64xf32, #tpu.memory_space<vmem>>, vector<1x64x64xf32>
    %47 = vector.shape_cast %46 : vector<1x64x64xf32> to vector<64x64xf32>
    %cst_60 = arith.constant dense<0.000000e+00> : vector<16x64xf32>
    %48 = tpu.matmul %45, %47, %cst_60 {dimension_numbers = #tpu.dot_dimension_numbers<[1], [0], [0], [1], [0, 0, 1, 1], [], []>} : vector<16x64xf32>, vector<64x64xf32>, vector<16x64xf32> -> vector<16x64xf32>
    %49 = arith.addf %44, %48 : vector<16x64xf32>
    %c1_61 = arith.constant 1 : index
    %c0_62 = arith.constant 0 : index
    %50 = vector.load %arg14[%c1_61, %c0_62] : memref<18x64xf32, #tpu.memory_space<vmem>>, vector<16x64xf32>
    %c1_63 = arith.constant 1 : index
    %c0_64 = arith.constant 0 : index
    %c0_65 = arith.constant 0 : index
    %51 = vector.load %arg7[%c1_63, %c0_64, %c0_65] : memref<3x64x64xf32, #tpu.memory_space<vmem>>, vector<1x64x64xf32>
    %52 = vector.shape_cast %51 : vector<1x64x64xf32> to vector<64x64xf32>
    %cst_66 = arith.constant dense<0.000000e+00> : vector<16x64xf32>
    %53 = tpu.matmul %50, %52, %cst_66 {dimension_numbers = #tpu.dot_dimension_numbers<[1], [0], [0], [1], [0, 0, 1, 1], [], []>} : vector<16x64xf32>, vector<64x64xf32>, vector<16x64xf32> -> vector<16x64xf32>
    %54 = arith.addf %49, %53 : vector<16x64xf32>
    %c1_67 = arith.constant 1 : index
    %c0_68 = arith.constant 0 : index
    %55 = vector.load %arg15[%c1_67, %c0_68] : memref<18x64xf32, #tpu.memory_space<vmem>>, vector<16x64xf32>
    %c1_69 = arith.constant 1 : index
    %c0_70 = arith.constant 0 : index
    %c0_71 = arith.constant 0 : index
    %56 = vector.load %arg8[%c1_69, %c0_70, %c0_71] : memref<3x64x64xf32, #tpu.memory_space<vmem>>, vector<1x64x64xf32>
    %57 = vector.shape_cast %56 : vector<1x64x64xf32> to vector<64x64xf32>
    %cst_72 = arith.constant dense<0.000000e+00> : vector<16x64xf32>
    %58 = tpu.matmul %55, %57, %cst_72 {dimension_numbers = #tpu.dot_dimension_numbers<[1], [0], [0], [1], [0, 0, 1, 1], [], []>} : vector<16x64xf32>, vector<64x64xf32>, vector<16x64xf32> -> vector<16x64xf32>
    %59 = arith.addf %54, %58 : vector<16x64xf32>
    %c2_73 = arith.constant 2 : index
    %c0_74 = arith.constant 0 : index
    %60 = vector.load %arg14[%c2_73, %c0_74] : memref<18x64xf32, #tpu.memory_space<vmem>>, vector<16x64xf32>
    %c2_75 = arith.constant 2 : index
    %c0_76 = arith.constant 0 : index
    %c0_77 = arith.constant 0 : index
    %61 = vector.load %arg7[%c2_75, %c0_76, %c0_77] : memref<3x64x64xf32, #tpu.memory_space<vmem>>, vector<1x64x64xf32>
    %62 = vector.shape_cast %61 : vector<1x64x64xf32> to vector<64x64xf32>
    %cst_78 = arith.constant dense<0.000000e+00> : vector<16x64xf32>
    %63 = tpu.matmul %60, %62, %cst_78 {dimension_numbers = #tpu.dot_dimension_numbers<[1], [0], [0], [1], [0, 0, 1, 1], [], []>} : vector<16x64xf32>, vector<64x64xf32>, vector<16x64xf32> -> vector<16x64xf32>
    %64 = arith.addf %59, %63 : vector<16x64xf32>
    %c2_79 = arith.constant 2 : index
    %c0_80 = arith.constant 0 : index
    %65 = vector.load %arg15[%c2_79, %c0_80] : memref<18x64xf32, #tpu.memory_space<vmem>>, vector<16x64xf32>
    %c2_81 = arith.constant 2 : index
    %c0_82 = arith.constant 0 : index
    %c0_83 = arith.constant 0 : index
    %66 = vector.load %arg8[%c2_81, %c0_82, %c0_83] : memref<3x64x64xf32, #tpu.memory_space<vmem>>, vector<1x64x64xf32>
    %67 = vector.shape_cast %66 : vector<1x64x64xf32> to vector<64x64xf32>
    %cst_84 = arith.constant dense<0.000000e+00> : vector<16x64xf32>
    %68 = tpu.matmul %65, %67, %cst_84 {dimension_numbers = #tpu.dot_dimension_numbers<[1], [0], [0], [1], [0, 0, 1, 1], [], []>} : vector<16x64xf32>, vector<64x64xf32>, vector<16x64xf32> -> vector<16x64xf32>
    %69 = arith.addf %64, %68 : vector<16x64xf32>
    %cst_85 = arith.constant 1.000000e-01 : f32
    %70 = vector.broadcast %cst_85 : f32 to vector<16x64xf32>
    %71 = arith.mulf %70, %69 : vector<16x64xf32>
    %72 = arith.maximumf %69, %71 : vector<16x64xf32>
    %c0_86 = arith.constant 0 : index
    %c0_87 = arith.constant 0 : index
    %73 = vector.load %arg16[%c0_86, %c0_87] : memref<18x64xf32, #tpu.memory_space<vmem>>, vector<1x64xf32>
    tpu.vector_store %arg16[%c0_86, %c0_87], %1 {strides = array<i32>} : memref<18x64xf32, #tpu.memory_space<vmem>>, vector<1x64xf32>,
    %c17_88 = arith.constant 17 : index
    %c0_89 = arith.constant 0 : index
    %74 = vector.load %arg16[%c17_88, %c0_89] : memref<18x64xf32, #tpu.memory_space<vmem>>, vector<1x64xf32>
    tpu.vector_store %arg16[%c17_88, %c0_89], %1 {strides = array<i32>} : memref<18x64xf32, #tpu.memory_space<vmem>>, vector<1x64xf32>,
    %c1_90 = arith.constant 1 : index
    %c0_91 = arith.constant 0 : index
    %75 = vector.load %arg16[%c1_90, %c0_91] : memref<18x64xf32, #tpu.memory_space<vmem>>, vector<16x64xf32>
    tpu.vector_store %arg16[%c1_90, %c0_91], %72 {strides = array<i32>} : memref<18x64xf32, #tpu.memory_space<vmem>>, vector<16x64xf32>,
    %c0_92 = arith.constant 0 : index
    %c0_93 = arith.constant 0 : index
    %76 = vector.load %arg11[%c0_92, %c0_93] : memref<1x64xf32, #tpu.memory_space<vmem>>, vector<1x64xf32>
    %77 = vector.shape_cast %76 : vector<1x64xf32> to vector<1x64xf32>
    %78 = vector.broadcast %77 : vector<1x64xf32> to vector<16x64xf32>
    %c0_94 = arith.constant 0 : index
    %c0_95 = arith.constant 0 : index
    %79 = vector.load %arg16[%c0_94, %c0_95] : memref<18x64xf32, #tpu.memory_space<vmem>>, vector<16x64xf32>
    %c0_96 = arith.constant 0 : index
    %c0_97 = arith.constant 0 : index
    %c0_98 = arith.constant 0 : index
    %80 = vector.load %arg10[%c0_96, %c0_97, %c0_98] : memref<3x64x64xf32, #tpu.memory_space<vmem>>, vector<1x64x64xf32>
    %81 = vector.shape_cast %80 : vector<1x64x64xf32> to vector<64x64xf32>
    %cst_99 = arith.constant dense<0.000000e+00> : vector<16x64xf32>
    %82 = tpu.matmul %79, %81, %cst_99 {dimension_numbers = #tpu.dot_dimension_numbers<[1], [0], [0], [1], [0, 0, 1, 1], [], []>} : vector<16x64xf32>, vector<64x64xf32>, vector<16x64xf32> -> vector<16x64xf32>
    %83 = arith.addf %78, %82 : vector<16x64xf32>
    %c1_100 = arith.constant 1 : index
    %c0_101 = arith.constant 0 : index
    %84 = vector.load %arg16[%c1_100, %c0_101] : memref<18x64xf32, #tpu.memory_space<vmem>>, vector<16x64xf32>
    %c1_102 = arith.constant 1 : index
    %c0_103 = arith.constant 0 : index
    %c0_104 = arith.constant 0 : index
    %85 = vector.load %arg10[%c1_102, %c0_103, %c0_104] : memref<3x64x64xf32, #tpu.memory_space<vmem>>, vector<1x64x64xf32>
    %86 = vector.shape_cast %85 : vector<1x64x64xf32> to vector<64x64xf32>
    %cst_105 = arith.constant dense<0.000000e+00> : vector<16x64xf32>
    %87 = tpu.matmul %84, %86, %cst_105 {dimension_numbers = #tpu.dot_dimension_numbers<[1], [0], [0], [1], [0, 0, 1, 1], [], []>} : vector<16x64xf32>, vector<64x64xf32>, vector<16x64xf32> -> vector<16x64xf32>
    %88 = arith.addf %83, %87 : vector<16x64xf32>
    %c2_106 = arith.constant 2 : index
    %c0_107 = arith.constant 0 : index
    %89 = vector.load %arg16[%c2_106, %c0_107] : memref<18x64xf32, #tpu.memory_space<vmem>>, vector<16x64xf32>
    %c2_108 = arith.constant 2 : index
    %c0_109 = arith.constant 0 : index
    %c0_110 = arith.constant 0 : index
    %90 = vector.load %arg10[%c2_108, %c0_109, %c0_110] : memref<3x64x64xf32, #tpu.memory_space<vmem>>, vector<1x64x64xf32>
    %91 = vector.shape_cast %90 : vector<1x64x64xf32> to vector<64x64xf32>
    %cst_111 = arith.constant dense<0.000000e+00> : vector<16x64xf32>
    %92 = tpu.matmul %89, %91, %cst_111 {dimension_numbers = #tpu.dot_dimension_numbers<[1], [0], [0], [1], [0, 0, 1, 1], [], []>} : vector<16x64xf32>, vector<64x64xf32>, vector<16x64xf32> -> vector<16x64xf32>
    %93 = arith.addf %88, %92 : vector<16x64xf32>
    %cst_112 = arith.constant 1.000000e-01 : f32
    %94 = vector.broadcast %cst_112 : f32 to vector<16x64xf32>
    %95 = arith.mulf %94, %93 : vector<16x64xf32>
    %96 = arith.maximumf %93, %95 : vector<16x64xf32>
    %c0_113 = arith.constant 0 : index
    %c0_114 = arith.constant 0 : index
    %c0_115 = arith.constant 0 : index
    %97 = vector.load %arg12[%c0_113, %c0_114, %c0_115] : memref<1x16x64xf32, #tpu.memory_space<vmem>>, vector<1x16x64xf32>
    %98 = vector.shape_cast %97 : vector<1x16x64xf32> to vector<16x64xf32>
    %99 = vector.shape_cast %96 : vector<16x64xf32> to vector<1x16x64xf32>
    tpu.vector_store %arg12[%c0_113, %c0_114, %c0_115], %99 {strides = array<i32>} : memref<1x16x64xf32, #tpu.memory_space<vmem>>, vector<1x16x64xf32>,
    return
  }
  func.func @transform_0(%arg0: i32) -> (i32, i32, i32) {
    %c0_i32 = arith.constant 0 : i32
    %c0_i32_0 = arith.constant 0 : i32
    %c0_i32_1 = arith.constant 0 : i32
    return %arg0, %c0_i32, %c0_i32_0 : i32, i32, i32
  }
  func.func @transform_1(%arg0: i32) -> (i32, i32, i32) {
    %c0_i32 = arith.constant 0 : i32
    %c0_i32_0 = arith.constant 0 : i32
    %c0_i32_1 = arith.constant 0 : i32
    return %arg0, %c0_i32, %c0_i32_0 : i32, i32, i32
  }
  func.func @transform_2(%arg0: i32) -> (i32, i32) {
    %c0_i32 = arith.constant 0 : i32
    %c0_i32_0 = arith.constant 0 : i32
    %c0_i32_1 = arith.constant 0 : i32
    return %c0_i32, %c0_i32_0 : i32, i32
  }
  func.func @transform_3(%arg0: i32) -> (i32, i32) {
    %c0_i32 = arith.constant 0 : i32
    %c0_i32_0 = arith.constant 0 : i32
    %c0_i32_1 = arith.constant 0 : i32
    return %c0_i32, %c0_i32_0 : i32, i32
  }
  func.func @transform_4(%arg0: i32) -> (i32, i32, i32) {
    %c0_i32 = arith.constant 0 : i32
    %c0_i32_0 = arith.constant 0 : i32
    %c0_i32_1 = arith.constant 0 : i32
    %c0_i32_2 = arith.constant 0 : i32
    return %c0_i32, %c0_i32_0, %c0_i32_1 : i32, i32, i32
  }
  func.func @transform_5(%arg0: i32) -> (i32, i32) {
    %c0_i32 = arith.constant 0 : i32
    %c0_i32_0 = arith.constant 0 : i32
    %c0_i32_1 = arith.constant 0 : i32
    return %c0_i32, %c0_i32_0 : i32, i32
  }
  func.func @transform_6(%arg0: i32) -> (i32, i32, i32) {
    %c0_i32 = arith.constant 0 : i32
    %c0_i32_0 = arith.constant 0 : i32
    %c0_i32_1 = arith.constant 0 : i32
    %c0_i32_2 = arith.constant 0 : i32
    return %c0_i32, %c0_i32_0, %c0_i32_1 : i32, i32, i32
  }
  func.func @transform_7(%arg0: i32) -> (i32, i32, i32) {
    %c0_i32 = arith.constant 0 : i32
    %c0_i32_0 = arith.constant 0 : i32
    %c0_i32_1 = arith.constant 0 : i32
    %c0_i32_2 = arith.constant 0 : i32
    return %c0_i32, %c0_i32_0, %c0_i32_1 : i32, i32, i32
  }
  func.func @transform_8(%arg0: i32) -> (i32, i32) {
    %c0_i32 = arith.constant 0 : i32
    %c0_i32_0 = arith.constant 0 : i32
    %c0_i32_1 = arith.constant 0 : i32
    return %c0_i32, %c0_i32_0 : i32, i32
  }
  func.func @transform_9(%arg0: i32) -> (i32, i32, i32) {
    %c0_i32 = arith.constant 0 : i32
    %c0_i32_0 = arith.constant 0 : i32
    %c0_i32_1 = arith.constant 0 : i32
    %c0_i32_2 = arith.constant 0 : i32
    return %c0_i32, %c0_i32_0, %c0_i32_1 : i32, i32, i32
  }
  func.func @transform_10(%arg0: i32) -> (i32, i32) {
    %c0_i32 = arith.constant 0 : i32
    %c0_i32_0 = arith.constant 0 : i32
    %c0_i32_1 = arith.constant 0 : i32
    return %c0_i32, %c0_i32_0 : i32, i32
  }
  func.func @transform_11(%arg0: i32) -> (i32, i32, i32) {
    %c0_i32 = arith.constant 0 : i32
    %c0_i32_0 = arith.constant 0 : i32
    %c0_i32_1 = arith.constant 0 : i32
    return %arg0, %c0_i32, %c0_i32_0 : i32, i32, i32
  }
}

</mosaic_0001>

<llo_original>
// kernel: tile.23
$region0: #{tile.23}
  #allocation0 [shape = 's32[1]{0}', space=sflag, size = 0x4, scoped, tag = 'scoped memory for tile.23']
  %s0 = inlined_call_operand.vmem [shape: f32[4], index: 0, kind: input, shape index: {}]
  %s1 = inlined_call_operand.vmem [shape: f32[16,4], index: 1, kind: output, shape index: {}]
  // Predicated region
  $region2: #{tile.23} parent=0 // pred_check
    _
  $region3: #{tile.23} parent=0 // pred_check_branch
    %3 = sbr.rel (0) target = $region5
  $region4: #{tile.23} parent=0 // pred_region
    _
  $region5: #{tile.23} parent=0 // pred_fallthru
    _
  %v4 = vld [vmem:[%s0] ss:$0 sm:$0xff]
  %5 = vst [vmem:[%s1] sm:$0xff] %v4
  %s6 = scalar_lea.vmem %s1, 8
  %7 = vst [vmem:[%s6] sm:$0xff] %v4

// kernel: tile.24
$region0: #{tile.24}
  %s0 = inlined_call_operand.vmem [shape: f32[16,4], index: 0, kind: input, shape index: {}]
  %s1 = inlined_call_operand.vmem [shape: f32[1,64], index: 1, kind: output, shape index: {}]
  $region1: #{tile.24} parent=0
    #allocation0 [shape = 'u8[4096]{0}', space=vmem, size = 0x1000, scoped, tag = 'scoped mem for output reshape']
    %v2 = vld [vmem:[%s0] sm:$0x1]
    %vm3 = vcmask 31744
    %4 = vst.msk [vmem:[#allocation0] sm:$0x1] %vm3, %v2
    %s5 = scalar_lea.vmem %s0, 15
    %v6 = vld [vmem:[%s5] sm:$0x1]
    %7 = vrot.lane.b32.xlu0 %v6, 60
    %v8 = vpop.permute.xlu0 %7
    %vm9 = vcmask 523744
    %10 = vst.msk [vmem:[#allocation0] sm:$0x1] %vm9, %v8
    %s11 = scalar_lea.vmem %s0, 14
    %v12 = vld [vmem:[%s11] sm:$0x1]
    %13 = vrot.lane.b32.xlu0 %v12, 56
    %v14 = vpop.permute.xlu0 %13
    %vm15 = vcmask 490944
    %16 = vst.msk [vmem:[#allocation0] sm:$0x1] %vm15, %v14
    %s17 = scalar_lea.vmem %s0, 13
    %v18 = vld [vmem:[%s17] sm:$0x1]
    %19 = vrot.lane.b32.xlu0 %v18, 52
    %v20 = vpop.permute.xlu0 %19
    %vm21 = vcmask 458144
    %22 = vst.msk [vmem:[#allocation0] sm:$0x1] %vm21, %v20
    %s23 = scalar_lea.vmem %s0, 12
    %v24 = vld [vmem:[%s23] sm:$0x1]
    %25 = vrot.lane.b32.xlu0 %v24, 48
    %v26 = vpop.permute.xlu0 %25
    %vm27 = vcmask 425344
    %28 = vst.msk [vmem:[#allocation0] sm:$0x1] %vm27, %v26
    %s29 = scalar_lea.vmem %s0, 11
    %v30 = vld [vmem:[%s29] sm:$0x1]
    %31 = vrot.lane.b32.xlu0 %v30, 44
    %v32 = vpop.permute.xlu0 %31
    %vm33 = vcmask 392544
    %34 = vst.msk [vmem:[#allocation0] sm:$0x1] %vm33, %v32
    %s35 = scalar_lea.vmem %s0, 10
    %v36 = vld [vmem:[%s35] sm:$0x1]
    %37 = vrot.lane.b32.xlu0 %v36, 40
    %v38 = vpop.permute.xlu0 %37
    %vm39 = vcmask 359744
    %40 = vst.msk [vmem:[#allocation0] sm:$0x1] %vm39, %v38
    %s41 = scalar_lea.vmem %s0, 9
    %v42 = vld [vmem:[%s41] sm:$0x1]
    %43 = vrot.lane.b32.xlu0 %v42, 36
    %v44 = vpop.permute.xlu0 %43
    %vm45 = vcmask 326944
    %46 = vst.msk [vmem:[#allocation0] sm:$0x1] %vm45, %v44
    %s47 = scalar_lea.vmem %s0, 8
    %v48 = vld [vmem:[%s47] sm:$0x1]
    %49 = vrot.lane.b32.xlu0 %v48, 32
    %v50 = vpop.permute.xlu0 %49
    %vm51 = vcmask 294144
    %52 = vst.msk [vmem:[#allocation0] sm:$0x1] %vm51, %v50
    %s53 = scalar_lea.vmem %s0, 7
    %v54 = vld [vmem:[%s53] sm:$0x1]
    %55 = vrot.lane.b32.xlu0 %v54, 28
    %v56 = vpop.permute.xlu0 %55
    %vm57 = vcmask 261344
    %58 = vst.msk [vmem:[#allocation0] sm:$0x1] %vm57, %v56
    %s59 = scalar_lea.vmem %s0, 6
    %v60 = vld [vmem:[%s59] sm:$0x1]
    %61 = vrot.lane.b32.xlu0 %v60, 24
    %v62 = vpop.permute.xlu0 %61
    %vm63 = vcmask 228544
    %64 = vst.msk [vmem:[#allocation0] sm:$0x1] %vm63, %v62
    %s65 = scalar_lea.vmem %s0, 5
    %v66 = vld [vmem:[%s65] sm:$0x1]
    %67 = vrot.lane.b32.xlu0 %v66, 20
    %v68 = vpop.permute.xlu0 %67
    %vm69 = vcmask 195744
    %70 = vst.msk [vmem:[#allocation0] sm:$0x1] %vm69, %v68
    %s71 = scalar_lea.vmem %s0, 4
    %v72 = vld [vmem:[%s71] sm:$0x1]
    %73 = vrot.lane.b32.xlu0 %v72, 16
    %v74 = vpop.permute.xlu0 %73
    %vm75 = vcmask 162944
    %76 = vst.msk [vmem:[#allocation0] sm:$0x1] %vm75, %v74
    %s77 = scalar_lea.vmem %s0, 3
    %v78 = vld [vmem:[%s77] sm:$0x1]
    %79 = vrot.lane.b32.xlu0 %v78, 12
    %v80 = vpop.permute.xlu0 %79
    %vm81 = vcmask 130144
    %82 = vst.msk [vmem:[#allocation0] sm:$0x1] %vm81, %v80
    %s83 = scalar_lea.vmem %s0, 2
    %v84 = vld [vmem:[%s83] sm:$0x1]
    %85 = vrot.lane.b32.xlu0 %v84, 8
    %v86 = vpop.permute.xlu0 %85
    %vm87 = vcmask 97344
    %88 = vst.msk [vmem:[#allocation0] sm:$0x1] %vm87, %v86
    %s89 = scalar_lea.vmem %s0, 1
    %v90 = vld [vmem:[%s89] sm:$0x1]
    %91 = vrot.lane.b32.xlu0 %v90, 4
    %v92 = vpop.permute.xlu0 %91
    %vm93 = vcmask 64544
    %94 = vst.msk [vmem:[#allocation0] sm:$0x1] %vm93, %v92
    %s96 = sshllo.u32 0, 1
    %v98 = vld [vmem:[#allocation0] sm:%s96]
    %s99 = sshllo.u32 0, 1
    %100 = vst [vmem:[%s1] sm:%s99] %v98

// kernel: unet_up_block_forward.1
$region0: #{unet_up_block_forward.1}
  #allocation0 [shape = 'u32[]', space=smem, size = 0x4, offset = 0x4, fixed_abs, tag = 'smem constant byte address 0x4 - core index']
  #allocation1 [shape = 'u32[144,128]{1,0:T(1,128)}', space=vmem, size = 0x12000, scoped, tag = 'internal scratch']
  #allocation2 [shape = 'f32[18,128]{1,0:T(8,128)}', space=vmem, size = 0x3000, scoped, tag = 'scratch operand']
  #allocation3 [shape = 'f32[18,64]{1,0:T(8,128)}', space=vmem, size = 0x3000, scoped, tag = 'scratch operand']
  #allocation4 [shape = 'f32[18,64]{1,0:T(8,128)}', space=vmem, size = 0x3000, scoped, tag = 'scratch operand']
  #allocation5 [shape = 'f32[18,64]{1,0:T(8,128)}', space=vmem, size = 0x3000, scoped, tag = 'scratch operand']
  %s0 = inlined_call_operand.vmem [shape: f32[2,8,64], index: 0, kind: input, shape index: {}]
  %s1 = inlined_call_operand.vmem [shape: f32[2,16,64], index: 1, kind: input, shape index: {}]
  %s2 = inlined_call_operand.vmem [shape: f32[16,8], index: 2, kind: input, shape index: {}]
  %s3 = inlined_call_operand.vmem [shape: f32[64,128], index: 3, kind: input, shape index: {}]
  %s4 = inlined_call_operand.vmem [shape: f32[3,128,64], index: 4, kind: input, shape index: {}]
  %s5 = inlined_call_operand.vmem [shape: f32[1,64], index: 5, kind: input, shape index: {}]
  %s6 = inlined_call_operand.vmem [shape: f32[3,64,64], index: 6, kind: input, shape index: {}]
  %s7 = inlined_call_operand.vmem [shape: f32[3,64,64], index: 7, kind: input, shape index: {}]
  %s8 = inlined_call_operand.vmem [shape: f32[1,64], index: 8, kind: input, shape index: {}]
  %s9 = inlined_call_operand.vmem [shape: f32[3,64,64], index: 9, kind: input, shape index: {}]
  %s10 = inlined_call_operand.vmem [shape: f32[1,64], index: 10, kind: input, shape index: {}]
  %s11 = inlined_call_operand.vmem [shape: f32[2,16,64], index: 11, kind: output, shape index: {}]
  %s12 = sld [smem:[#allocation0]]
  $region77: #{unet_up_block_forward.1} parent=0
    _
  %s14 = ssub.s32 1, %s12
  %s15 = scalar_select 0, %s14, %s12
  loop: start=0, step=1, limit=4
  $region2: #{unet_up_block_forward.1} parent=0 // loop_pre_header
    _
  $region3: #{unet_up_block_forward.1} parent=0 // loop_header
    %s17 = sphi 0, %s21
    %p18 = scmp.ge.s32.totalorder %s17, 4
    %s27 = sphi 0, %s29
    %s30 = sphi 0, %s27
    %s31 = sphi 0, %s30
    %s47 = sphi 0, %s31
    %s53 = sphi 0, %s55
    %s56 = sphi 0, %s53
    %s57 = sphi 0, %s56
    %s73 = sphi 0, %s57
    %s77 = sphi 0, %s77
    %s79 = sphi 0, %s77
    %s80 = sphi 0, %s79
    %s94 = sphi 0, %s80
    %s98 = sphi 0, %s98
    %s100 = sphi 0, %s98
    %s101 = sphi 0, %s100
    %s115 = sphi 0, %s101
    %s119 = sphi 0, %s119
    %s121 = sphi 0, %s119
    %s122 = sphi 0, %s121
    %s136 = sphi 0, %s122
    %s140 = sphi 0, %s140
    %s142 = sphi 0, %s140
    %s143 = sphi 0, %s142
    %s157 = sphi 0, %s143
    %s161 = sphi 0, %s161
    %s163 = sphi 0, %s161
    %s164 = sphi 0, %s163
    %s178 = sphi 0, %s164
    %s182 = sphi 0, %s182
    %s184 = sphi 0, %s182
    %s185 = sphi 0, %s184
    %s199 = sphi 0, %s185
    %s203 = sphi 0, %s203
    %s205 = sphi 0, %s203
    %s206 = sphi 0, %s205
    %s220 = sphi 0, %s206
    %s224 = sphi 0, %s224
    %s226 = sphi 0, %s224
    %s227 = sphi 0, %s226
    %s241 = sphi 0, %s227
    %s245 = sphi 0, %s245
    %s247 = sphi 0, %s245
    %s248 = sphi 0, %s247
    %s262 = sphi 0, %s248
    %s268 = sphi 0, %s270
    %s271 = sphi 0, %s268
    %s272 = sphi 0, %s271
    %s288 = sphi 0, %s272
  $region4: #{unet_up_block_forward.1} parent=0 // loop_header_branch
    %20 = sbr.rel (%p18) target = $region8
  $region5: #{unet_up_block_forward.1} parent=0 // loop_body
    %s22 = ssub.s32 %s17, 1
    %s23 = ssub.s32 %s17, 2
    %s24 = sadd.s32 %s17, 1
    %s25 = ssub.s32 %s17, %s24
    %p26 = scmp.eq.s32.totalorder %s25, 0
    %s28 = sadd.s32 %s27, 1
    %s29 = scalar_select %p26, %s27, %s28
    %p32 = pneg %p26
    %p33 = scmp.eq.s32.totalorder %s17, 1
    %p34 = por %p32, %p33
    %p35 = scmp.ne.s32.totalorder %s27, %s30
    %p36 = scmp.eq.s32.totalorder %s17, 0
    %p37 = por %p35, %p36
    %p38 = scmp.ne.s32.totalorder %s27, %s30
    %p39 = scmp.eq.s32.totalorder %s22, 1
    %p40 = por %p38, %p39
    %p41 = scmp.ne.s32.totalorder %s30, %s31
    %p42 = scmp.eq.s32.totalorder %s22, 0
    %p43 = por %p41, %p42
    %p44 = scmp.ne.s32.totalorder %s30, %s31
    %p45 = scmp.eq.s32.totalorder %s23, 1
    %p46 = por %p44, %p45
    %p48 = scmp.ne.s32.totalorder %s31, %s47
    %p49 = scmp.eq.s32.totalorder %s23, 0
    %p50 = por %p48, %p49
    %s51 = ssub.s32 %s17, %s24
    %p52 = scmp.eq.s32.totalorder %s51, 0
    %s54 = sadd.s32 %s53, 1
    %s55 = scalar_select %p52, %s53, %s54
    %p58 = pneg %p52
    %p59 = scmp.eq.s32.totalorder %s17, 1
    %p60 = por %p58, %p59
    %p61 = scmp.ne.s32.totalorder %s53, %s56
    %p62 = scmp.eq.s32.totalorder %s17, 0
    %p63 = por %p61, %p62
    %p64 = scmp.ne.s32.totalorder %s53, %s56
    %p65 = scmp.eq.s32.totalorder %s22, 1
    %p66 = por %p64, %p65
    %p67 = scmp.ne.s32.totalorder %s56, %s57
    %p68 = scmp.eq.s32.totalorder %s22, 0
    %p69 = por %p67, %p68
    %p70 = scmp.ne.s32.totalorder %s56, %s57
    %p71 = scmp.eq.s32.totalorder %s23, 1
    %p72 = por %p70, %p71
    %p74 = scmp.ne.s32.totalorder %s57, %s73
    %p75 = scmp.eq.s32.totalorder %s23, 0
    %p76 = por %p74, %p75
    %s78 = sadd.s32 %s77, 1
    %p81 = scmp.eq.s32.totalorder %s17, 1
    %p82 = scmp.ne.s32.totalorder %s77, %s79
    %p83 = scmp.eq.s32.totalorder %s17, 0
    %p84 = por %p82, %p83
    %p85 = scmp.ne.s32.totalorder %s77, %s79
    %p86 = scmp.eq.s32.totalorder %s22, 1
    %p87 = por %p85, %p86
    %p88 = scmp.ne.s32.totalorder %s79, %s80
    %p89 = scmp.eq.s32.totalorder %s22, 0
    %p90 = por %p88, %p89
    %p91 = scmp.ne.s32.totalorder %s79, %s80
    %p92 = scmp.eq.s32.totalorder %s23, 1
    %p93 = por %p91, %p92
    %p95 = scmp.ne.s32.totalorder %s80, %s94
    %p96 = scmp.eq.s32.totalorder %s23, 0
    %p97 = por %p95, %p96
    %s99 = sadd.s32 %s98, 1
    %p102 = scmp.eq.s32.totalorder %s17, 1
    %p103 = scmp.ne.s32.totalorder %s98, %s100
    %p104 = scmp.eq.s32.totalorder %s17, 0
    %p105 = por %p103, %p104
    %p106 = scmp.ne.s32.totalorder %s98, %s100
    %p107 = scmp.eq.s32.totalorder %s22, 1
    %p108 = por %p106, %p107
    %p109 = scmp.ne.s32.totalorder %s100, %s101
    %p110 = scmp.eq.s32.totalorder %s22, 0
    %p111 = por %p109, %p110
    %p112 = scmp.ne.s32.totalorder %s100, %s101
    %p113 = scmp.eq.s32.totalorder %s23, 1
    %p114 = por %p112, %p113
    %p116 = scmp.ne.s32.totalorder %s101, %s115
    %p117 = scmp.eq.s32.totalorder %s23, 0
    %p118 = por %p116, %p117
    %s120 = sadd.s32 %s119, 1
    %p123 = scmp.eq.s32.totalorder %s17, 1
    %p124 = scmp.ne.s32.totalorder %s119, %s121
    %p125 = scmp.eq.s32.totalorder %s17, 0
    %p126 = por %p124, %p125
    %p127 = scmp.ne.s32.totalorder %s119, %s121
    %p128 = scmp.eq.s32.totalorder %s22, 1
    %p129 = por %p127, %p128
    %p130 = scmp.ne.s32.totalorder %s121, %s122
    %p131 = scmp.eq.s32.totalorder %s22, 0
    %p132 = por %p130, %p131
    %p133 = scmp.ne.s32.totalorder %s121, %s122
    %p134 = scmp.eq.s32.totalorder %s23, 1
    %p135 = por %p133, %p134
    %p137 = scmp.ne.s32.totalorder %s122, %s136
    %p138 = scmp.eq.s32.totalorder %s23, 0
    %p139 = por %p137, %p138
    %s141 = sadd.s32 %s140, 1
    %p144 = scmp.eq.s32.totalorder %s17, 1
    %p145 = scmp.ne.s32.totalorder %s140, %s142
    %p146 = scmp.eq.s32.totalorder %s17, 0
    %p147 = por %p145, %p146
    %p148 = scmp.ne.s32.totalorder %s140, %s142
    %p149 = scmp.eq.s32.totalorder %s22, 1
    %p150 = por %p148, %p149
    %p151 = scmp.ne.s32.totalorder %s142, %s143
    %p152 = scmp.eq.s32.totalorder %s22, 0
    %p153 = por %p151, %p152
    %p154 = scmp.ne.s32.totalorder %s142, %s143
    %p155 = scmp.eq.s32.totalorder %s23, 1
    %p156 = por %p154, %p155
    %p158 = scmp.ne.s32.totalorder %s143, %s157
    %p159 = scmp.eq.s32.totalorder %s23, 0
    %p160 = por %p158, %p159
    %s162 = sadd.s32 %s161, 1
    %p165 = scmp.eq.s32.totalorder %s17, 1
    %p166 = scmp.ne.s32.totalorder %s161, %s163
    %p167 = scmp.eq.s32.totalorder %s17, 0
    %p168 = por %p166, %p167
    %p169 = scmp.ne.s32.totalorder %s161, %s163
    %p170 = scmp.eq.s32.totalorder %s22, 1
    %p171 = por %p169, %p170
    %p172 = scmp.ne.s32.totalorder %s163, %s164
    %p173 = scmp.eq.s32.totalorder %s22, 0
    %p174 = por %p172, %p173
    %p175 = scmp.ne.s32.totalorder %s163, %s164
    %p176 = scmp.eq.s32.totalorder %s23, 1
    %p177 = por %p175, %p176
    %p179 = scmp.ne.s32.totalorder %s164, %s178
    %p180 = scmp.eq.s32.totalorder %s23, 0
    %p181 = por %p179, %p180
    %s183 = sadd.s32 %s182, 1
    %p186 = scmp.eq.s32.totalorder %s17, 1
    %p187 = scmp.ne.s32.totalorder %s182, %s184
    %p188 = scmp.eq.s32.totalorder %s17, 0
    %p189 = por %p187, %p188
    %p190 = scmp.ne.s32.totalorder %s182, %s184
    %p191 = scmp.eq.s32.totalorder %s22, 1
    %p192 = por %p190, %p191
    %p193 = scmp.ne.s32.totalorder %s184, %s185
    %p194 = scmp.eq.s32.totalorder %s22, 0
    %p195 = por %p193, %p194
    %p196 = scmp.ne.s32.totalorder %s184, %s185
    %p197 = scmp.eq.s32.totalorder %s23, 1
    %p198 = por %p196, %p197
    %p200 = scmp.ne.s32.totalorder %s185, %s199
    %p201 = scmp.eq.s32.totalorder %s23, 0
    %p202 = por %p200, %p201
    %s204 = sadd.s32 %s203, 1
    %p207 = scmp.eq.s32.totalorder %s17, 1
    %p208 = scmp.ne.s32.totalorder %s203, %s205
    %p209 = scmp.eq.s32.totalorder %s17, 0
    %p210 = por %p208, %p209
    %p211 = scmp.ne.s32.totalorder %s203, %s205
    %p212 = scmp.eq.s32.totalorder %s22, 1
    %p213 = por %p211, %p212
    %p214 = scmp.ne.s32.totalorder %s205, %s206
    %p215 = scmp.eq.s32.totalorder %s22, 0
    %p216 = por %p214, %p215
    %p217 = scmp.ne.s32.totalorder %s205, %s206
    %p218 = scmp.eq.s32.totalorder %s23, 1
    %p219 = por %p217, %p218
    %p221 = scmp.ne.s32.totalorder %s206, %s220
    %p222 = scmp.eq.s32.totalorder %s23, 0
    %p223 = por %p221, %p222
    %s225 = sadd.s32 %s224, 1
    %p228 = scmp.eq.s32.totalorder %s17, 1
    %p229 = scmp.ne.s32.totalorder %s224, %s226
    %p230 = scmp.eq.s32.totalorder %s17, 0
    %p231 = por %p229, %p230
    %p232 = scmp.ne.s32.totalorder %s224, %s226
    %p233 = scmp.eq.s32.totalorder %s22, 1
    %p234 = por %p232, %p233
    %p235 = scmp.ne.s32.totalorder %s226, %s227
    %p236 = scmp.eq.s32.totalorder %s22, 0
    %p237 = por %p235, %p236
    %p238 = scmp.ne.s32.totalorder %s226, %s227
    %p239 = scmp.eq.s32.totalorder %s23, 1
    %p240 = por %p238, %p239
    %p242 = scmp.ne.s32.totalorder %s227, %s241
    %p243 = scmp.eq.s32.totalorder %s23, 0
    %p244 = por %p242, %p243
    %s246 = sadd.s32 %s245, 1
    %p249 = scmp.eq.s32.totalorder %s17, 1
    %p250 = scmp.ne.s32.totalorder %s245, %s247
    %p251 = scmp.eq.s32.totalorder %s17, 0
    %p252 = por %p250, %p251
    %p253 = scmp.ne.s32.totalorder %s245, %s247
    %p254 = scmp.eq.s32.totalorder %s22, 1
    %p255 = por %p253, %p254
    %p256 = scmp.ne.s32.totalorder %s247, %s248
    %p257 = scmp.eq.s32.totalorder %s22, 0
    %p258 = por %p256, %p257
    %p259 = scmp.ne.s32.totalorder %s247, %s248
    %p260 = scmp.eq.s32.totalorder %s23, 1
    %p261 = por %p259, %p260
    %p263 = scmp.ne.s32.totalorder %s248, %s262
    %p264 = scmp.eq.s32.totalorder %s23, 0
    %p265 = por %p263, %p264
    %s266 = ssub.s32 %s17, %s24
    %p267 = scmp.eq.s32.totalorder %s266, 0
    %s269 = sadd.s32 %s268, 1
    %s270 = scalar_select %p267, %s268, %s269
    %p273 = pneg %p267
    %p274 = scmp.eq.s32.totalorder %s17, 1
    %p275 = por %p273, %p274
    %p276 = scmp.ne.s32.totalorder %s268, %s271
    %p277 = scmp.eq.s32.totalorder %s17, 0
    %p278 = por %p276, %p277
    %p279 = scmp.ne.s32.totalorder %s268, %s271
    %p280 = scmp.eq.s32.totalorder %s22, 1
    %p281 = por %p279, %p280
    %p282 = scmp.ne.s32.totalorder %s271, %s272
    %p283 = scmp.eq.s32.totalorder %s22, 0
    %p284 = por %p282, %p283
    %p285 = scmp.ne.s32.totalorder %s271, %s272
    %p286 = scmp.eq.s32.totalorder %s23, 1
    %p287 = por %p285, %p286
    %p289 = scmp.ne.s32.totalorder %s272, %s288
    %p290 = scmp.eq.s32.totalorder %s23, 0
    %p291 = por %p289, %p290
    %p292 = scmp.le.s32.totalorder 1, %s17
    %p293 = scmp.lt.s32.totalorder %s17, 3
    %p294 = pnand %p292, %p293
    %p295 = pneg %p294
    // Predicated region
    $region9: #{unet_up_block_forward.1} parent=5 // pred_check
      _
    $region10: #{unet_up_block_forward.1} parent=5 // pred_check_branch
      %297 = sbr.rel (%p294) target = $region12
    $region11: #{unet_up_block_forward.1} parent=5 // pred_region
      %s298 = ssub.s32 %s17, 1
      // Predicated region
      $region13: #{unet_up_block_forward.1} parent=11 // pred_check
        %p299 = pneg %p90
      $region14: #{unet_up_block_forward.1} parent=11 // pred_check_branch
        %301 = sbr.rel (%p299) target = $region16
      $region15: #{unet_up_block_forward.1} parent=11 // pred_region
        _
      $region16: #{unet_up_block_forward.1} parent=11 // pred_fallthru
        _
      // Predicated region
      $region17: #{unet_up_block_forward.1} parent=11 // pred_check
        %p302 = pneg %p111
      $region18: #{unet_up_block_forward.1} parent=11 // pred_check_branch
        %304 = sbr.rel (%p302) target = $region20
      $region19: #{unet_up_block_forward.1} parent=11 // pred_region
        _
      $region20: #{unet_up_block_forward.1} parent=11 // pred_fallthru
        _
      // Predicated region
      $region21: #{unet_up_block_forward.1} parent=11 // pred_check
        %p305 = pneg %p132
      $region22: #{unet_up_block_forward.1} parent=11 // pred_check_branch
        %307 = sbr.rel (%p305) target = $region24
      $region23: #{unet_up_block_forward.1} parent=11 // pred_region
        _
      $region24: #{unet_up_block_forward.1} parent=11 // pred_fallthru
        _
      // Predicated region
      $region25: #{unet_up_block_forward.1} parent=11 // pred_check
        %p308 = pneg %p153
      $region26: #{unet_up_block_forward.1} parent=11 // pred_check_branch
        %310 = sbr.rel (%p308) target = $region28
      $region27: #{unet_up_block_forward.1} parent=11 // pred_region
        _
      $region28: #{unet_up_block_forward.1} parent=11 // pred_fallthru
        _
      // Predicated region
      $region29: #{unet_up_block_forward.1} parent=11 // pred_check
        %p311 = pneg %p174
      $region30: #{unet_up_block_forward.1} parent=11 // pred_check_branch
        %313 = sbr.rel (%p311) target = $region32
      $region31: #{unet_up_block_forward.1} parent=11 // pred_region
        _
      $region32: #{unet_up_block_forward.1} parent=11 // pred_fallthru
        _
      // Predicated region
      $region33: #{unet_up_block_forward.1} parent=11 // pred_check
        %p314 = pneg %p195
      $region34: #{unet_up_block_forward.1} parent=11 // pred_check_branch
        %316 = sbr.rel (%p314) target = $region36
      $region35: #{unet_up_block_forward.1} parent=11 // pred_region
        _
      $region36: #{unet_up_block_forward.1} parent=11 // pred_fallthru
        _
      // Predicated region
      $region37: #{unet_up_block_forward.1} parent=11 // pred_check
        %p317 = pneg %p216
      $region38: #{unet_up_block_forward.1} parent=11 // pred_check_branch
        %319 = sbr.rel (%p317) target = $region40
      $region39: #{unet_up_block_forward.1} parent=11 // pred_region
        _
      $region40: #{unet_up_block_forward.1} parent=11 // pred_fallthru
        _
      // Predicated region
      $region41: #{unet_up_block_forward.1} parent=11 // pred_check
        %p320 = pneg %p237
      $region42: #{unet_up_block_forward.1} parent=11 // pred_check_branch
        %322 = sbr.rel (%p320) target = $region44
      $region43: #{unet_up_block_forward.1} parent=11 // pred_region
        _
      $region44: #{unet_up_block_forward.1} parent=11 // pred_fallthru
        _
      // Predicated region
      $region45: #{unet_up_block_forward.1} parent=11 // pred_check
        %p323 = pneg %p258
      $region46: #{unet_up_block_forward.1} parent=11 // pred_check_branch
        %325 = sbr.rel (%p323) target = $region48
      $region47: #{unet_up_block_forward.1} parent=11 // pred_region
        _
      $region48: #{unet_up_block_forward.1} parent=11 // pred_fallthru
        _
    $region12: #{unet_up_block_forward.1} parent=5 // pred_fallthru
      _
    %p326 = scmp.lt.s32.totalorder %s17, 2
    // Predicated region
    $region49: #{unet_up_block_forward.1} parent=5 // pred_check
      %p327 = pneg %p326
    $region50: #{unet_up_block_forward.1} parent=5 // pred_check_branch
      %329 = sbr.rel (%p327) target = $region52
    $region51: #{unet_up_block_forward.1} parent=5 // pred_region
      // Predicated region
      $region53: #{unet_up_block_forward.1} parent=51 // pred_check
        %p330 = pneg %p37
      $region54: #{unet_up_block_forward.1} parent=51 // pred_check_branch
        %332 = sbr.rel (%p330) target = $region56
      $region55: #{unet_up_block_forward.1} parent=51 // pred_region
        %p333 = scmp.lt.s32.totalorder %s17, 1
        %s334 = scalar_select %p333, %s17, 1
        %s335 = smul.addr %s334, 8
        %s336 = scalar_lea.vmem %s0, %s335
      $region56: #{unet_up_block_forward.1} parent=51 // pred_fallthru
        _
      // Predicated region
      $region57: #{unet_up_block_forward.1} parent=51 // pred_check
        %p337 = pneg %p63
      $region58: #{unet_up_block_forward.1} parent=51 // pred_check_branch
        %339 = sbr.rel (%p337) target = $region60
      $region59: #{unet_up_block_forward.1} parent=51 // pred_region
        %p340 = scmp.lt.s32.totalorder %s17, 1
        %s341 = scalar_select %p340, %s17, 1
        %s342 = smul.addr %s341, 2
        %s343 = smul.addr %s342, 8
        %s344 = scalar_lea.vmem %s1, %s343
      $region60: #{unet_up_block_forward.1} parent=51 // pred_fallthru
        _
    $region52: #{unet_up_block_forward.1} parent=5 // pred_fallthru
      _
    %p345 = scmp.le.s32.totalorder 1, %s17
    %p346 = scmp.lt.s32.totalorder %s17, 3
    %p347 = pnand %p345, %p346
    %p348 = pneg %p347
    // Predicated region
    $region61: #{unet_up_block_forward.1} parent=5 // pred_check
      _
    $region62: #{unet_up_block_forward.1} parent=5 // pred_check_branch
      %350 = sbr.rel (%p347) target = $region64
    $region63: #{unet_up_block_forward.1} parent=5 // pred_region
      %s351 = ssub.s32 %s17, 1
      %p352 = scmp.lt.s32.totalorder %s22, 1
      %s353 = scalar_select %p352, %s22, 1
      %s354 = smul.addr %s353, 8
      %s355 = scalar_lea.vmem %s0, %s354
      %p356 = pneg %p43
      %p357 = pneg %p40
      %p358 = scmp.lt.s32.totalorder %s22, 1
      %s359 = scalar_select %p358, %s22, 1
      %s360 = smul.addr %s359, 2
      %s361 = smul.addr %s360, 8
      %s362 = scalar_lea.vmem %s1, %s361
      %p363 = pneg %p69
      %p364 = pneg %p66
      %p365 = pneg %p90
      %p366 = pneg %p87
      %p367 = pneg %p111
      %p368 = pneg %p108
      %p369 = pneg %p132
      %p370 = pneg %p129
      %p371 = pneg %p153
      %p372 = pneg %p150
      %p373 = pneg %p174
      %p374 = pneg %p171
      %p375 = pneg %p195
      %p376 = pneg %p192
      %p377 = pneg %p216
      %p378 = pneg %p213
      %p379 = pneg %p237
      %p380 = pneg %p234
      %p381 = pneg %p258
      %p382 = pneg %p255
      %p383 = pneg %p284
      %p384 = pneg %p281
      %p385 = scmp.lt.s32.totalorder %s22, 1
      %s386 = scalar_select %p385, %s22, 1
      %s387 = smul.addr %s386, 2
      %s388 = smul.addr %s387, 8
      %s389 = scalar_lea.vmem %s11, %s388
      %p390 = scmp.lt.s32.totalorder %s22, 1
      %s391 = scalar_select %p390, %s22, 1
      %s392 = smul.addr %s391, 8
      %s393 = scalar_lea.vmem %s0, %s392
      %p394 = scmp.lt.s32.totalorder %s22, 1
      %s395 = scalar_select %p394, %s22, 1
      %s396 = smul.addr %s395, 2
      %s397 = smul.addr %s396, 8
      %s398 = scalar_lea.vmem %s1, %s397
      %p399 = scmp.lt.s32.totalorder %s22, 1
      %s400 = scalar_select %p399, %s22, 1
      %s401 = smul.addr %s400, 2
      %s402 = smul.addr %s401, 8
      %s403 = scalar_lea.vmem %s11, %s402
      %v404 = vld [vmem:[%s393] sm:$0xff]
      %v405 = vld [vmem:[%s2] sm:$0xff]
      %v406 = vld [vmem:[%s2 + $0x8] sm:$0xff]
      %vm407 = vcmask 64512
      %v409 = vsel %vm407, %v405, 0
      %v412 = vsel %vm407, %v406, 0
      %414 = vmatprep.subr.mxu0 0.0
      %415 = vmatpush1.msra.mxu0 %v404
      %416 = vmatprep.subr.mxu0 0.0
      %417 = vmatpush1.msra.mxu0 0.0
      %418 = vmatprep.subr.mxu0 0.0
      %419 = vmatpush1.msra.mxu0 0.0
      %420 = vmatprep.subr.mxu0 0.0
      %421 = vmatpush1.msra.mxu0 0.0
      %422 = vmatprep.subr.mxu0 0.0
      %423 = vmatpush1.msra.mxu0 0.0
      %424 = vmatprep.subr.mxu0 0.0
      %425 = vmatpush1.msra.mxu0 0.0
      %426 = vmatprep.subr.mxu0 0.0
      %427 = vmatpush1.msra.mxu0 0.0
      %428 = vmatprep.subr.mxu0 0.0
      %429 = vmatpush1.msra.mxu0 0.0
      %430 = vmatprep.subr.mxu0 0.0
      %431 = vmatpush1.msra.mxu0 0.0
      %432 = vmatprep.subr.mxu0 0.0
      %433 = vmatpush1.msra.mxu0 0.0
      %434 = vmatprep.subr.mxu0 0.0
      %435 = vmatpush1.msra.mxu0 0.0
      %436 = vmatprep.subr.mxu0 0.0
      %437 = vmatpush1.msra.mxu0 0.0
      %438 = vmatprep.subr.mxu0 0.0
      %439 = vmatpush1.msra.mxu0 0.0
      %440 = vmatprep.subr.mxu0 0.0
      %441 = vmatpush1.msra.mxu0 0.0
      %442 = vmatprep.subr.mxu0 0.0
      %443 = vmatpush1.msra.mxu0 0.0
      %444 = vmatprep.subr.mxu0 0.0
      %445 = vmatpush1.msra.mxu0 0.0
      %446 = vmatprep.subr.mxu0 0.0
      %447 = vmatpush1.msra.mxu0 0.0
      %448 = vmatprep.subr.mxu0 0.0
      %449 = vmatpush1.msra.mxu0 0.0
      %450 = vmatprep.subr.mxu0 0.0
      %451 = vmatpush1.msra.mxu0 0.0
      %452 = vmatprep.subr.mxu0 0.0
      %453 = vmatpush1.msra.mxu0 0.0
      %454 = vmatprep.subr.mxu0 0.0
      %455 = vmatpush1.msra.mxu0 0.0
      %456 = vmatprep.subr.mxu0 0.0
      %457 = vmatpush1.msra.mxu0 0.0
      %458 = vmatprep.subr.mxu0 0.0
      %459 = vmatpush1.msra.mxu0 0.0
      %460 = vmatprep.subr.mxu0 0.0
      %461 = vmatpush1.msra.mxu0 0.0
      %462 = vmatprep.subr.mxu0 0.0
      %463 = vmatpush1.msra.mxu0 0.0
      %464 = vmatprep.subr.mxu0 0.0
      %465 = vmatpush1.msra.mxu0 0.0
      %466 = vmatprep.subr.mxu0 0.0
      %467 = vmatpush1.msra.mxu0 0.0
      %468 = vmatprep.subr.mxu0 0.0
      %469 = vmatpush1.msra.mxu0 0.0
      %470 = vmatprep.subr.mxu0 0.0
      %471 = vmatpush1.msra.mxu0 0.0
      %472 = vmatprep.subr.mxu0 0.0
      %473 = vmatpush1.msra.mxu0 0.0
      %474 = vmatprep.subr.mxu0 0.0
      %475 = vmatpush1.msra.mxu0 0.0
      %476 = vmatprep.subr.mxu0 0.0
      %477 = vmatpush1.msra.mxu0 0.0
      %478 = vmatprep.mubr.f32.mxu0 0.0
      %479 = vmatmul.mubr.f32.gmra.mrb[0].mxu0 %v409
      %v480 = vpop.f32.mrb[0].mxu0
      %v481 = vadd.f32 0.0, %v480
      %v482 = vpop.f32.mrb[0].mxu0
      %483 = vmatprep.mubr.f32.mxu0 0.0
      %484 = vmatmul.mubr.f32.gmra.mrb[0].mxu0 %v412
      %v485 = vpop.f32.mrb[0].mxu0
      %v486 = vadd.f32 0.0, %v485
      %v487 = vpop.f32.mrb[0].mxu0
      %488 = vdwg.mxu0
      %v489 = vld [vmem:[%s3] sm:$0xff]
      %v490 = vld [vmem:[%s3 + $0x8] sm:$0xff]
      %v491 = vld [vmem:[%s3 + $0x10] sm:$0xff]
      %v492 = vld [vmem:[%s3 + $0x18] sm:$0xff]
      %v493 = vld [vmem:[%s3 + $0x20] sm:$0xff]
      %v494 = vld [vmem:[%s3 + $0x28] sm:$0xff]
      %v495 = vld [vmem:[%s3 + $0x30] sm:$0xff]
      %v496 = vld [vmem:[%s3 + $0x38] sm:$0xff]
      %vm497 = vcmask 523264
      %v499 = vsel %vm497, %v481, 0
      %v502 = vsel %vm497, %v486, 0
      %504 = vmatprep.subr.mxu0 0.0
      %505 = vmatpush1.msra.mxu0 %v489
      %506 = vmatprep.subr.mxu0 0.0
      %507 = vmatpush1.msra.mxu0 %v490
      %508 = vmatprep.subr.mxu0 0.0
      %509 = vmatpush1.msra.mxu0 %v491
      %510 = vmatprep.subr.mxu0 0.0
      %511 = vmatpush1.msra.mxu0 %v492
      %512 = vmatprep.subr.mxu0 0.0
      %513 = vmatpush1.msra.mxu0 %v493
      %514 = vmatprep.subr.mxu0 0.0
      %515 = vmatpush1.msra.mxu0 %v494
      %516 = vmatprep.subr.mxu0 0.0
      %517 = vmatpush1.msra.mxu0 %v495
      %518 = vmatprep.subr.mxu0 0.0
      %519 = vmatpush1.msra.mxu0 %v496
      %520 = vmatprep.subr.mxu0 0.0
      %521 = vmatpush1.msra.mxu0 0.0
      %522 = vmatprep.subr.mxu0 0.0
      %523 = vmatpush1.msra.mxu0 0.0
      %524 = vmatprep.subr.mxu0 0.0
      %525 = vmatpush1.msra.mxu0 0.0
      %526 = vmatprep.subr.mxu0 0.0
      %527 = vmatpush1.msra.mxu0 0.0
      %528 = vmatprep.subr.mxu0 0.0
      %529 = vmatpush1.msra.mxu0 0.0
      %530 = vmatprep.subr.mxu0 0.0
      %531 = vmatpush1.msra.mxu0 0.0
      %532 = vmatprep.subr.mxu0 0.0
      %533 = vmatpush1.msra.mxu0 0.0
      %534 = vmatprep.subr.mxu0 0.0
      %535 = vmatpush1.msra.mxu0 0.0
      %536 = vmatprep.subr.mxu0 0.0
      %537 = vmatpush1.msra.mxu0 0.0
      %538 = vmatprep.subr.mxu0 0.0
      %539 = vmatpush1.msra.mxu0 0.0
      %540 = vmatprep.subr.mxu0 0.0
      %541 = vmatpush1.msra.mxu0 0.0
      %542 = vmatprep.subr.mxu0 0.0
      %543 = vmatpush1.msra.mxu0 0.0
      %544 = vmatprep.subr.mxu0 0.0
      %545 = vmatpush1.msra.mxu0 0.0
      %546 = vmatprep.subr.mxu0 0.0
      %547 = vmatpush1.msra.mxu0 0.0
      %548 = vmatprep.subr.mxu0 0.0
      %549 = vmatpush1.msra.mxu0 0.0
      %550 = vmatprep.subr.mxu0 0.0
      %551 = vmatpush1.msra.mxu0 0.0
      %552 = vmatprep.subr.mxu0 0.0
      %553 = vmatpush1.msra.mxu0 0.0
      %554 = vmatprep.subr.mxu0 0.0
      %555 = vmatpush1.msra.mxu0 0.0
      %556 = vmatprep.subr.mxu0 0.0
      %557 = vmatpush1.msra.mxu0 0.0
      %558 = vmatprep.subr.mxu0 0.0
      %559 = vmatpush1.msra.mxu0 0.0
      %560 = vmatprep.subr.mxu0 0.0
      %561 = vmatpush1.msra.mxu0 0.0
      %562 = vmatprep.subr.mxu0 0.0
      %563 = vmatpush1.msra.mxu0 0.0
      %564 = vmatprep.subr.mxu0 0.0
      %565 = vmatpush1.msra.mxu0 0.0
      %566 = vmatprep.subr.mxu0 0.0
      %567 = vmatpush1.msra.mxu0 0.0
      %568 = vmatprep.mubr.f32.mxu0 0.0
      %569 = vmatmul.mubr.f32.gmra.mrb[0].mxu0 %v499
      %v570 = vpop.f32.mrb[0].mxu0
      %v571 = vadd.f32 0.0, %v570
      %v572 = vpop.f32.mrb[0].mxu0
      %573 = vmatprep.mubr.f32.mxu0 0.0
      %574 = vmatmul.mubr.f32.gmra.mrb[0].mxu0 %v502
      %v575 = vpop.f32.mrb[0].mxu0
      %v576 = vadd.f32 0.0, %v575
      %v577 = vpop.f32.mrb[0].mxu0
      %578 = vdwg.mxu0
      %579 = vst [vmem:[#allocation2] sm:$0x1] 0.0
      %580 = vst [vmem:[#allocation2 + $0x11] sm:$0x1] 0.0
      %581 = vst [vmem:[#allocation2 + $0x1] sm:$0xff] %v571
      %582 = vst [vmem:[#allocation2 + $0x9] sm:$0xff] %v576
      %v583 = vld [vmem:[%s5] sm:$0x1]
      %v585 = vlaneseq
      %v586 = vshrl.u32 %v585, 7
      %v587 = vsub.s32 0, %v586
      %v588 = vrot.slane %v583, %v587
      %v590 = vld [vmem:[#allocation2] sm:$0xff]
      %v591 = vld [vmem:[#allocation2 + $0x8] sm:$0xff]
      %v592 = vld [vmem:[%s4] sm:$0xff]
      %v593 = vld [vmem:[%s4 + $0x8] sm:$0xff]
      %v594 = vld [vmem:[%s4 + $0x10] sm:$0xff]
      %v595 = vld [vmem:[%s4 + $0x18] sm:$0xff]
      %v596 = vld [vmem:[%s4 + $0x20] sm:$0xff]
      %v597 = vld [vmem:[%s4 + $0x28] sm:$0xff]
      %v598 = vld [vmem:[%s4 + $0x30] sm:$0xff]
      %v599 = vld [vmem:[%s4 + $0x38] sm:$0xff]
      %v600 = vld [vmem:[%s4 + $0x40] sm:$0xff]
      %v601 = vld [vmem:[%s4 + $0x48] sm:$0xff]
      %v602 = vld [vmem:[%s4 + $0x50] sm:$0xff]
      %v603 = vld [vmem:[%s4 + $0x58] sm:$0xff]
      %v604 = vld [vmem:[%s4 + $0x60] sm:$0xff]
      %v605 = vld [vmem:[%s4 + $0x68] sm:$0xff]
      %v606 = vld [vmem:[%s4 + $0x70] sm:$0xff]
      %v607 = vld [vmem:[%s4 + $0x78] sm:$0xff]
      %608 = vmatprep.subr.mxu0 0.0
      %609 = vmatpush1.msra.mxu0 %v592
      %610 = vmatprep.subr.mxu0 0.0
      %611 = vmatpush1.msra.mxu0 %v593
      %612 = vmatprep.subr.mxu0 0.0
      %613 = vmatpush1.msra.mxu0 %v594
      %614 = vmatprep.subr.mxu0 0.0
      %615 = vmatpush1.msra.mxu0 %v595
      %616 = vmatprep.subr.mxu0 0.0
      %617 = vmatpush1.msra.mxu0 %v596
      %618 = vmatprep.subr.mxu0 0.0
      %619 = vmatpush1.msra.mxu0 %v597
      %620 = vmatprep.subr.mxu0 0.0
      %621 = vmatpush1.msra.mxu0 %v598
      %622 = vmatprep.subr.mxu0 0.0
      %623 = vmatpush1.msra.mxu0 %v599
      %624 = vmatprep.subr.mxu0 0.0
      %625 = vmatpush1.msra.mxu0 %v600
      %626 = vmatprep.subr.mxu0 0.0
      %627 = vmatpush1.msra.mxu0 %v601
      %628 = vmatprep.subr.mxu0 0.0
      %629 = vmatpush1.msra.mxu0 %v602
      %630 = vmatprep.subr.mxu0 0.0
      %631 = vmatpush1.msra.mxu0 %v603
      %632 = vmatprep.subr.mxu0 0.0
      %633 = vmatpush1.msra.mxu0 %v604
      %634 = vmatprep.subr.mxu0 0.0
      %635 = vmatpush1.msra.mxu0 %v605
      %636 = vmatprep.subr.mxu0 0.0
      %637 = vmatpush1.msra.mxu0 %v606
      %638 = vmatprep.subr.mxu0 0.0
      %639 = vmatpush1.msra.mxu0 %v607
      %640 = vmatprep.subr.mxu0 0.0
      %641 = vmatpush1.msra.mxu0 0.0
      %642 = vmatprep.subr.mxu0 0.0
      %643 = vmatpush1.msra.mxu0 0.0
      %644 = vmatprep.subr.mxu0 0.0
      %645 = vmatpush1.msra.mxu0 0.0
      %646 = vmatprep.subr.mxu0 0.0
      %647 = vmatpush1.msra.mxu0 0.0
      %648 = vmatprep.subr.mxu0 0.0
      %649 = vmatpush1.msra.mxu0 0.0
      %650 = vmatprep.subr.mxu0 0.0
      %651 = vmatpush1.msra.mxu0 0.0
      %652 = vmatprep.subr.mxu0 0.0
      %653 = vmatpush1.msra.mxu0 0.0
      %654 = vmatprep.subr.mxu0 0.0
      %655 = vmatpush1.msra.mxu0 0.0
      %656 = vmatprep.subr.mxu0 0.0
      %657 = vmatpush1.msra.mxu0 0.0
      %658 = vmatprep.subr.mxu0 0.0
      %659 = vmatpush1.msra.mxu0 0.0
      %660 = vmatprep.subr.mxu0 0.0
      %661 = vmatpush1.msra.mxu0 0.0
      %662 = vmatprep.subr.mxu0 0.0
      %663 = vmatpush1.msra.mxu0 0.0
      %664 = vmatprep.subr.mxu0 0.0
      %665 = vmatpush1.msra.mxu0 0.0
      %666 = vmatprep.subr.mxu0 0.0
      %667 = vmatpush1.msra.mxu0 0.0
      %668 = vmatprep.subr.mxu0 0.0
      %669 = vmatpush1.msra.mxu0 0.0
      %670 = vmatprep.subr.mxu0 0.0
      %671 = vmatpush1.msra.mxu0 0.0
      %672 = vmatprep.mubr.f32.mxu0 0.0
      %673 = vmatmul.mubr.f32.gmra.mrb[0].mxu0 %v590
      %v674 = vpop.f32.mrb[0].mxu0
      %v675 = vadd.f32 0.0, %v674
      %v676 = vpop.f32.mrb[0].mxu0
      %677 = vmatprep.mubr.f32.mxu0 0.0
      %678 = vmatmul.mubr.f32.gmra.mrb[0].mxu0 %v591
      %v679 = vpop.f32.mrb[0].mxu0
      %v680 = vadd.f32 0.0, %v679
      %v681 = vpop.f32.mrb[0].mxu0
      %682 = vdwg.mxu0
      %v683 = vadd.f32 %v588, %v675
      %v684 = vadd.f32 %v588, %v680
      %v685 = vld [vmem:[#allocation2 + $0x1] sm:$0xff]
      %v686 = vld [vmem:[#allocation2 + $0x9] sm:$0xff]
      %s687 = scalar_lea.vmem %s4, 128
      %v688 = vld [vmem:[%s687] sm:$0xff]
      %v689 = vld [vmem:[%s687 + $0x8] sm:$0xff]
      %v690 = vld [vmem:[%s687 + $0x10] sm:$0xff]
      %v691 = vld [vmem:[%s687 + $0x18] sm:$0xff]
      %v692 = vld [vmem:[%s687 + $0x20] sm:$0xff]
      %v693 = vld [vmem:[%s687 + $0x28] sm:$0xff]
      %v694 = vld [vmem:[%s687 + $0x30] sm:$0xff]
      %v695 = vld [vmem:[%s687 + $0x38] sm:$0xff]
      %v696 = vld [vmem:[%s687 + $0x40] sm:$0xff]
      %v697 = vld [vmem:[%s687 + $0x48] sm:$0xff]
      %v698 = vld [vmem:[%s687 + $0x50] sm:$0xff]
      %v699 = vld [vmem:[%s687 + $0x58] sm:$0xff]
      %v700 = vld [vmem:[%s687 + $0x60] sm:$0xff]
      %v701 = vld [vmem:[%s687 + $0x68] sm:$0xff]
      %v702 = vld [vmem:[%s687 + $0x70] sm:$0xff]
      %v703 = vld [vmem:[%s687 + $0x78] sm:$0xff]
      %704 = vmatprep.subr.mxu0 0.0
      %705 = vmatpush1.msra.mxu0 %v688
      %706 = vmatprep.subr.mxu0 0.0
      %707 = vmatpush1.msra.mxu0 %v689
      %708 = vmatprep.subr.mxu0 0.0
      %709 = vmatpush1.msra.mxu0 %v690
      %710 = vmatprep.subr.mxu0 0.0
      %711 = vmatpush1.msra.mxu0 %v691
      %712 = vmatprep.subr.mxu0 0.0
      %713 = vmatpush1.msra.mxu0 %v692
      %714 = vmatprep.subr.mxu0 0.0
      %715 = vmatpush1.msra.mxu0 %v693
      %716 = vmatprep.subr.mxu0 0.0
      %717 = vmatpush1.msra.mxu0 %v694
      %718 = vmatprep.subr.mxu0 0.0
      %719 = vmatpush1.msra.mxu0 %v695
      %720 = vmatprep.subr.mxu0 0.0
      %721 = vmatpush1.msra.mxu0 %v696
      %722 = vmatprep.subr.mxu0 0.0
      %723 = vmatpush1.msra.mxu0 %v697
      %724 = vmatprep.subr.mxu0 0.0
      %725 = vmatpush1.msra.mxu0 %v698
      %726 = vmatprep.subr.mxu0 0.0
      %727 = vmatpush1.msra.mxu0 %v699
      %728 = vmatprep.subr.mxu0 0.0
      %729 = vmatpush1.msra.mxu0 %v700
      %730 = vmatprep.subr.mxu0 0.0
      %731 = vmatpush1.msra.mxu0 %v701
      %732 = vmatprep.subr.mxu0 0.0
      %733 = vmatpush1.msra.mxu0 %v702
      %734 = vmatprep.subr.mxu0 0.0
      %735 = vmatpush1.msra.mxu0 %v703
      %736 = vmatprep.subr.mxu0 0.0
      %737 = vmatpush1.msra.mxu0 0.0
      %738 = vmatprep.subr.mxu0 0.0
      %739 = vmatpush1.msra.mxu0 0.0
      %740 = vmatprep.subr.mxu0 0.0
      %741 = vmatpush1.msra.mxu0 0.0
      %742 = vmatprep.subr.mxu0 0.0
      %743 = vmatpush1.msra.mxu0 0.0
      %744 = vmatprep.subr.mxu0 0.0
      %745 = vmatpush1.msra.mxu0 0.0
      %746 = vmatprep.subr.mxu0 0.0
      %747 = vmatpush1.msra.mxu0 0.0
      %748 = vmatprep.subr.mxu0 0.0
      %749 = vmatpush1.msra.mxu0 0.0
      %750 = vmatprep.subr.mxu0 0.0
      %751 = vmatpush1.msra.mxu0 0.0
      %752 = vmatprep.subr.mxu0 0.0
      %753 = vmatpush1.msra.mxu0 0.0
      %754 = vmatprep.subr.mxu0 0.0
      %755 = vmatpush1.msra.mxu0 0.0
      %756 = vmatprep.subr.mxu0 0.0
      %757 = vmatpush1.msra.mxu0 0.0
      %758 = vmatprep.subr.mxu0 0.0
      %759 = vmatpush1.msra.mxu0 0.0
      %760 = vmatprep.subr.mxu0 0.0
      %761 = vmatpush1.msra.mxu0 0.0
      %762 = vmatprep.subr.mxu0 0.0
      %763 = vmatpush1.msra.mxu0 0.0
      %764 = vmatprep.subr.mxu0 0.0
      %765 = vmatpush1.msra.mxu0 0.0
      %766 = vmatprep.subr.mxu0 0.0
      %767 = vmatpush1.msra.mxu0 0.0
      %768 = vmatprep.mubr.f32.mxu0 0.0
      %769 = vmatmul.mubr.f32.gmra.mrb[0].mxu0 %v685
      %v770 = vpop.f32.mrb[0].mxu0
      %v771 = vadd.f32 0.0, %v770
      %v772 = vpop.f32.mrb[0].mxu0
      %773 = vmatprep.mubr.f32.mxu0 0.0
      %774 = vmatmul.mubr.f32.gmra.mrb[0].mxu0 %v686
      %v775 = vpop.f32.mrb[0].mxu0
      %v776 = vadd.f32 0.0, %v775
      %v777 = vpop.f32.mrb[0].mxu0
      %778 = vdwg.mxu0
      %v779 = vadd.f32 %v683, %v771
      %v780 = vadd.f32 %v684, %v776
      %v781 = vld [vmem:[#allocation2 + $0x2] sm:$0xff]
      %v782 = vld [vmem:[#allocation2 + $0xa] sm:$0xff]
      %s783 = scalar_lea.vmem %s4, 256
      %v784 = vld [vmem:[%s783] sm:$0xff]
      %v785 = vld [vmem:[%s783 + $0x8] sm:$0xff]
      %v786 = vld [vmem:[%s783 + $0x10] sm:$0xff]
      %v787 = vld [vmem:[%s783 + $0x18] sm:$0xff]
      %v788 = vld [vmem:[%s783 + $0x20] sm:$0xff]
      %v789 = vld [vmem:[%s783 + $0x28] sm:$0xff]
      %v790 = vld [vmem:[%s783 + $0x30] sm:$0xff]
      %v791 = vld [vmem:[%s783 + $0x38] sm:$0xff]
      %v792 = vld [vmem:[%s783 + $0x40] sm:$0xff]
      %v793 = vld [vmem:[%s783 + $0x48] sm:$0xff]
      %v794 = vld [vmem:[%s783 + $0x50] sm:$0xff]
      %v795 = vld [vmem:[%s783 + $0x58] sm:$0xff]
      %v796 = vld [vmem:[%s783 + $0x60] sm:$0xff]
      %v797 = vld [vmem:[%s783 + $0x68] sm:$0xff]
      %v798 = vld [vmem:[%s783 + $0x70] sm:$0xff]
      %v799 = vld [vmem:[%s783 + $0x78] sm:$0xff]
      %800 = vmatprep.subr.mxu0 0.0
      %801 = vmatpush1.msra.mxu0 %v784
      %802 = vmatprep.subr.mxu0 0.0
      %803 = vmatpush1.msra.mxu0 %v785
      %804 = vmatprep.subr.mxu0 0.0
      %805 = vmatpush1.msra.mxu0 %v786
      %806 = vmatprep.subr.mxu0 0.0
      %807 = vmatpush1.msra.mxu0 %v787
      %808 = vmatprep.subr.mxu0 0.0
      %809 = vmatpush1.msra.mxu0 %v788
      %810 = vmatprep.subr.mxu0 0.0
      %811 = vmatpush1.msra.mxu0 %v789
      %812 = vmatprep.subr.mxu0 0.0
      %813 = vmatpush1.msra.mxu0 %v790
      %814 = vmatprep.subr.mxu0 0.0
      %815 = vmatpush1.msra.mxu0 %v791
      %816 = vmatprep.subr.mxu0 0.0
      %817 = vmatpush1.msra.mxu0 %v792
      %818 = vmatprep.subr.mxu0 0.0
      %819 = vmatpush1.msra.mxu0 %v793
      %820 = vmatprep.subr.mxu0 0.0
      %821 = vmatpush1.msra.mxu0 %v794
      %822 = vmatprep.subr.mxu0 0.0
      %823 = vmatpush1.msra.mxu0 %v795
      %824 = vmatprep.subr.mxu0 0.0
      %825 = vmatpush1.msra.mxu0 %v796
      %826 = vmatprep.subr.mxu0 0.0
      %827 = vmatpush1.msra.mxu0 %v797
      %828 = vmatprep.subr.mxu0 0.0
      %829 = vmatpush1.msra.mxu0 %v798
      %830 = vmatprep.subr.mxu0 0.0
      %831 = vmatpush1.msra.mxu0 %v799
      %832 = vmatprep.subr.mxu0 0.0
      %833 = vmatpush1.msra.mxu0 0.0
      %834 = vmatprep.subr.mxu0 0.0
      %835 = vmatpush1.msra.mxu0 0.0
      %836 = vmatprep.subr.mxu0 0.0
      %837 = vmatpush1.msra.mxu0 0.0
      %838 = vmatprep.subr.mxu0 0.0
      %839 = vmatpush1.msra.mxu0 0.0
      %840 = vmatprep.subr.mxu0 0.0
      %841 = vmatpush1.msra.mxu0 0.0
      %842 = vmatprep.subr.mxu0 0.0
      %843 = vmatpush1.msra.mxu0 0.0
      %844 = vmatprep.subr.mxu0 0.0
      %845 = vmatpush1.msra.mxu0 0.0
      %846 = vmatprep.subr.mxu0 0.0
      %847 = vmatpush1.msra.mxu0 0.0
      %848 = vmatprep.subr.mxu0 0.0
      %849 = vmatpush1.msra.mxu0 0.0
      %850 = vmatprep.subr.mxu0 0.0
      %851 = vmatpush1.msra.mxu0 0.0
      %852 = vmatprep.subr.mxu0 0.0
      %853 = vmatpush1.msra.mxu0 0.0
      %854 = vmatprep.subr.mxu0 0.0
      %855 = vmatpush1.msra.mxu0 0.0
      %856 = vmatprep.subr.mxu0 0.0
      %857 = vmatpush1.msra.mxu0 0.0
      %858 = vmatprep.subr.mxu0 0.0
      %859 = vmatpush1.msra.mxu0 0.0
      %860 = vmatprep.subr.mxu0 0.0
      %861 = vmatpush1.msra.mxu0 0.0
      %862 = vmatprep.subr.mxu0 0.0
      %863 = vmatpush1.msra.mxu0 0.0
      %864 = vmatprep.mubr.f32.mxu0 0.0
      %865 = vmatmul.mubr.f32.gmra.mrb[0].mxu0 %v781
      %v866 = vpop.f32.mrb[0].mxu0
      %v867 = vadd.f32 0.0, %v866
      %v868 = vpop.f32.mrb[0].mxu0
      %869 = vmatprep.mubr.f32.mxu0 0.0
      %870 = vmatmul.mubr.f32.gmra.mrb[0].mxu0 %v782
      %v871 = vpop.f32.mrb[0].mxu0
      %v872 = vadd.f32 0.0, %v871
      %v873 = vpop.f32.mrb[0].mxu0
      %874 = vdwg.mxu0
      %v875 = vadd.f32 %v779, %v867
      %v876 = vadd.f32 %v780, %v872
      %vm877 = vcmask 516096
      %878 = vst.msk [vmem:[#allocation3] sm:$0x1] %vm877, 0.0
      %879 = vst.msk [vmem:[#allocation3 + $0x11] sm:$0x1] %vm877, 0.0
      %880 = vst.msk [vmem:[#allocation3 + $0x1] sm:$0xff] %vm497, %v875
      %881 = vst.msk [vmem:[#allocation3 + $0x9] sm:$0xff] %vm497, %v876
      %882 = vst.msk [vmem:[#allocation4] sm:$0x1] %vm877, 0.0
      %883 = vst.msk [vmem:[#allocation4 + $0x11] sm:$0x1] %vm877, 0.0
      %v884 = vld [vmem:[%s398] sm:$0xff]
      %v885 = vld [vmem:[%s398 + $0x8] sm:$0xff]
      %886 = vst.msk [vmem:[#allocation4 + $0x1] sm:$0xff] %vm497, %v884
      %887 = vst.msk [vmem:[#allocation4 + $0x9] sm:$0xff] %vm497, %v885
      %v888 = vld [vmem:[%s8] sm:$0x1]
      %v890 = vlaneseq
      %v891 = vshrl.u32 %v890, 7
      %v892 = vsub.s32 0, %v891
      %v893 = vrot.slane %v888, %v892
      %v895 = vld [vmem:[#allocation3] sm:$0xff]
      %v896 = vld [vmem:[#allocation3 + $0x8] sm:$0xff]
      %v897 = vld [vmem:[%s6] sm:$0xff]
      %v898 = vld [vmem:[%s6 + $0x8] sm:$0xff]
      %v899 = vld [vmem:[%s6 + $0x10] sm:$0xff]
      %v900 = vld [vmem:[%s6 + $0x18] sm:$0xff]
      %v901 = vld [vmem:[%s6 + $0x20] sm:$0xff]
      %v902 = vld [vmem:[%s6 + $0x28] sm:$0xff]
      %v903 = vld [vmem:[%s6 + $0x30] sm:$0xff]
      %v904 = vld [vmem:[%s6 + $0x38] sm:$0xff]
      %v906 = vsel %vm497, %v895, 0
      %v909 = vsel %vm497, %v896, 0
      %911 = vmatprep.subr.mxu0 0.0
      %912 = vmatpush1.msra.mxu0 %v897
      %913 = vmatprep.subr.mxu0 0.0
      %914 = vmatpush1.msra.mxu0 %v898
      %915 = vmatprep.subr.mxu0 0.0
      %916 = vmatpush1.msra.mxu0 %v899
      %917 = vmatprep.subr.mxu0 0.0
      %918 = vmatpush1.msra.mxu0 %v900
      %919 = vmatprep.subr.mxu0 0.0
      %920 = vmatpush1.msra.mxu0 %v901
      %921 = vmatprep.subr.mxu0 0.0
      %922 = vmatpush1.msra.mxu0 %v902
      %923 = vmatprep.subr.mxu0 0.0
      %924 = vmatpush1.msra.mxu0 %v903
      %925 = vmatprep.subr.mxu0 0.0
      %926 = vmatpush1.msra.mxu0 %v904
      %927 = vmatprep.subr.mxu0 0.0
      %928 = vmatpush1.msra.mxu0 0.0
      %929 = vmatprep.subr.mxu0 0.0
      %930 = vmatpush1.msra.mxu0 0.0
      %931 = vmatprep.subr.mxu0 0.0
      %932 = vmatpush1.msra.mxu0 0.0
      %933 = vmatprep.subr.mxu0 0.0
      %934 = vmatpush1.msra.mxu0 0.0
      %935 = vmatprep.subr.mxu0 0.0
      %936 = vmatpush1.msra.mxu0 0.0
      %937 = vmatprep.subr.mxu0 0.0
      %938 = vmatpush1.msra.mxu0 0.0
      %939 = vmatprep.subr.mxu0 0.0
      %940 = vmatpush1.msra.mxu0 0.0
      %941 = vmatprep.subr.mxu0 0.0
      %942 = vmatpush1.msra.mxu0 0.0
      %943 = vmatprep.subr.mxu0 0.0
      %944 = vmatpush1.msra.mxu0 0.0
      %945 = vmatprep.subr.mxu0 0.0
      %946 = vmatpush1.msra.mxu0 0.0
      %947 = vmatprep.subr.mxu0 0.0
      %948 = vmatpush1.msra.mxu0 0.0
      %949 = vmatprep.subr.mxu0 0.0
      %950 = vmatpush1.msra.mxu0 0.0
      %951 = vmatprep.subr.mxu0 0.0
      %952 = vmatpush1.msra.mxu0 0.0
      %953 = vmatprep.subr.mxu0 0.0
      %954 = vmatpush1.msra.mxu0 0.0
      %955 = vmatprep.subr.mxu0 0.0
      %956 = vmatpush1.msra.mxu0 0.0
      %957 = vmatprep.subr.mxu0 0.0
      %958 = vmatpush1.msra.mxu0 0.0
      %959 = vmatprep.subr.mxu0 0.0
      %960 = vmatpush1.msra.mxu0 0.0
      %961 = vmatprep.subr.mxu0 0.0
      %962 = vmatpush1.msra.mxu0 0.0
      %963 = vmatprep.subr.mxu0 0.0
      %964 = vmatpush1.msra.mxu0 0.0
      %965 = vmatprep.subr.mxu0 0.0
      %966 = vmatpush1.msra.mxu0 0.0
      %967 = vmatprep.subr.mxu0 0.0
      %968 = vmatpush1.msra.mxu0 0.0
      %969 = vmatprep.subr.mxu0 0.0
      %970 = vmatpush1.msra.mxu0 0.0
      %971 = vmatprep.subr.mxu0 0.0
      %972 = vmatpush1.msra.mxu0 0.0
      %973 = vmatprep.subr.mxu0 0.0
      %974 = vmatpush1.msra.mxu0 0.0
      %975 = vmatprep.mubr.f32.mxu0 0.0
      %976 = vmatmul.mubr.f32.gmra.mrb[0].mxu0 %v906
      %v977 = vpop.f32.mrb[0].mxu0
      %v978 = vadd.f32 0.0, %v977
      %v979 = vpop.f32.mrb[0].mxu0
      %980 = vmatprep.mubr.f32.mxu0 0.0
      %981 = vmatmul.mubr.f32.gmra.mrb[0].mxu0 %v909
      %v982 = vpop.f32.mrb[0].mxu0
      %v983 = vadd.f32 0.0, %v982
      %v984 = vpop.f32.mrb[0].mxu0
      %985 = vdwg.mxu0
      %v986 = vadd.f32 %v893, %v978
      %v987 = vadd.f32 %v893, %v983
      %v988 = vld [vmem:[#allocation4] sm:$0xff]
      %v989 = vld [vmem:[#allocation4 + $0x8] sm:$0xff]
      %v990 = vld [vmem:[%s7] sm:$0xff]
      %v991 = vld [vmem:[%s7 + $0x8] sm:$0xff]
      %v992 = vld [vmem:[%s7 + $0x10] sm:$0xff]
      %v993 = vld [vmem:[%s7 + $0x18] sm:$0xff]
      %v994 = vld [vmem:[%s7 + $0x20] sm:$0xff]
      %v995 = vld [vmem:[%s7 + $0x28] sm:$0xff]
      %v996 = vld [vmem:[%s7 + $0x30] sm:$0xff]
      %v997 = vld [vmem:[%s7 + $0x38] sm:$0xff]
      %v999 = vsel %vm497, %v988, 0
      %v1002 = vsel %vm497, %v989, 0
      %1004 = vmatprep.subr.mxu0 0.0
      %1005 = vmatpush1.msra.mxu0 %v990
      %1006 = vmatprep.subr.mxu0 0.0
      %1007 = vmatpush1.msra.mxu0 %v991
      %1008 = vmatprep.subr.mxu0 0.0
      %1009 = vmatpush1.msra.mxu0 %v992
      %1010 = vmatprep.subr.mxu0 0.0
      %1011 = vmatpush1.msra.mxu0 %v993
      %1012 = vmatprep.subr.mxu0 0.0
      %1013 = vmatpush1.msra.mxu0 %v994
      %1014 = vmatprep.subr.mxu0 0.0
      %1015 = vmatpush1.msra.mxu0 %v995
      %1016 = vmatprep.subr.mxu0 0.0
      %1017 = vmatpush1.msra.mxu0 %v996
      %1018 = vmatprep.subr.mxu0 0.0
      %1019 = vmatpush1.msra.mxu0 %v997
      %1020 = vmatprep.subr.mxu0 0.0
      %1021 = vmatpush1.msra.mxu0 0.0
      %1022 = vmatprep.subr.mxu0 0.0
      %1023 = vmatpush1.msra.mxu0 0.0
      %1024 = vmatprep.subr.mxu0 0.0
      %1025 = vmatpush1.msra.mxu0 0.0
      %1026 = vmatprep.subr.mxu0 0.0
      %1027 = vmatpush1.msra.mxu0 0.0
      %1028 = vmatprep.subr.mxu0 0.0
      %1029 = vmatpush1.msra.mxu0 0.0
      %1030 = vmatprep.subr.mxu0 0.0
      %1031 = vmatpush1.msra.mxu0 0.0
      %1032 = vmatprep.subr.mxu0 0.0
      %1033 = vmatpush1.msra.mxu0 0.0
      %1034 = vmatprep.subr.mxu0 0.0
      %1035 = vmatpush1.msra.mxu0 0.0
      %1036 = vmatprep.subr.mxu0 0.0
      %1037 = vmatpush1.msra.mxu0 0.0
      %1038 = vmatprep.subr.mxu0 0.0
      %1039 = vmatpush1.msra.mxu0 0.0
      %1040 = vmatprep.subr.mxu0 0.0
      %1041 = vmatpush1.msra.mxu0 0.0
      %1042 = vmatprep.subr.mxu0 0.0
      %1043 = vmatpush1.msra.mxu0 0.0
      %1044 = vmatprep.subr.mxu0 0.0
      %1045 = vmatpush1.msra.mxu0 0.0
      %1046 = vmatprep.subr.mxu0 0.0
      %1047 = vmatpush1.msra.mxu0 0.0
      %1048 = vmatprep.subr.mxu0 0.0
      %1049 = vmatpush1.msra.mxu0 0.0
      %1050 = vmatprep.subr.mxu0 0.0
      %1051 = vmatpush1.msra.mxu0 0.0
      %1052 = vmatprep.subr.mxu0 0.0
      %1053 = vmatpush1.msra.mxu0 0.0
      %1054 = vmatprep.subr.mxu0 0.0
      %1055 = vmatpush1.msra.mxu0 0.0
      %1056 = vmatprep.subr.mxu0 0.0
      %1057 = vmatpush1.msra.mxu0 0.0
      %1058 = vmatprep.subr.mxu0 0.0
      %1059 = vmatpush1.msra.mxu0 0.0
      %1060 = vmatprep.subr.mxu0 0.0
      %1061 = vmatpush1.msra.mxu0 0.0
      %1062 = vmatprep.subr.mxu0 0.0
      %1063 = vmatpush1.msra.mxu0 0.0
      %1064 = vmatprep.subr.mxu0 0.0
      %1065 = vmatpush1.msra.mxu0 0.0
      %1066 = vmatprep.subr.mxu0 0.0
      %1067 = vmatpush1.msra.mxu0 0.0
      %1068 = vmatprep.mubr.f32.mxu0 0.0
      %1069 = vmatmul.mubr.f32.gmra.mrb[0].mxu0 %v999
      %v1070 = vpop.f32.mrb[0].mxu0
      %v1071 = vadd.f32 0.0, %v1070
      %v1072 = vpop.f32.mrb[0].mxu0
      %1073 = vmatprep.mubr.f32.mxu0 0.0
      %1074 = vmatmul.mubr.f32.gmra.mrb[0].mxu0 %v1002
      %v1075 = vpop.f32.mrb[0].mxu0
      %v1076 = vadd.f32 0.0, %v1075
      %v1077 = vpop.f32.mrb[0].mxu0
      %1078 = vdwg.mxu0
      %v1079 = vadd.f32 %v986, %v1071
      %v1080 = vadd.f32 %v987, %v1076
      %v1081 = vld [vmem:[#allocation3 + $0x1] sm:$0xff]
      %v1082 = vld [vmem:[#allocation3 + $0x9] sm:$0xff]
      %s1083 = scalar_lea.vmem %s6, 64
      %v1084 = vld [vmem:[%s1083] sm:$0xff]
      %v1085 = vld [vmem:[%s1083 + $0x8] sm:$0xff]
      %v1086 = vld [vmem:[%s1083 + $0x10] sm:$0xff]
      %v1087 = vld [vmem:[%s1083 + $0x18] sm:$0xff]
      %v1088 = vld [vmem:[%s1083 + $0x20] sm:$0xff]
      %v1089 = vld [vmem:[%s1083 + $0x28] sm:$0xff]
      %v1090 = vld [vmem:[%s1083 + $0x30] sm:$0xff]
      %v1091 = vld [vmem:[%s1083 + $0x38] sm:$0xff]
      %v1093 = vsel %vm497, %v1081, 0
      %v1096 = vsel %vm497, %v1082, 0
      %1098 = vmatprep.subr.mxu0 0.0
      %1099 = vmatpush1.msra.mxu0 %v1084
      %1100 = vmatprep.subr.mxu0 0.0
      %1101 = vmatpush1.msra.mxu0 %v1085
      %1102 = vmatprep.subr.mxu0 0.0
      %1103 = vmatpush1.msra.mxu0 %v1086
      %1104 = vmatprep.subr.mxu0 0.0
      %1105 = vmatpush1.msra.mxu0 %v1087
      %1106 = vmatprep.subr.mxu0 0.0
      %1107 = vmatpush1.msra.mxu0 %v1088
      %1108 = vmatprep.subr.mxu0 0.0
      %1109 = vmatpush1.msra.mxu0 %v1089
      %1110 = vmatprep.subr.mxu0 0.0
      %1111 = vmatpush1.msra.mxu0 %v1090
      %1112 = vmatprep.subr.mxu0 0.0
      %1113 = vmatpush1.msra.mxu0 %v1091
      %1114 = vmatprep.subr.mxu0 0.0
      %1115 = vmatpush1.msra.mxu0 0.0
      %1116 = vmatprep.subr.mxu0 0.0
      %1117 = vmatpush1.msra.mxu0 0.0
      %1118 = vmatprep.subr.mxu0 0.0
      %1119 = vmatpush1.msra.mxu0 0.0
      %1120 = vmatprep.subr.mxu0 0.0
      %1121 = vmatpush1.msra.mxu0 0.0
      %1122 = vmatprep.subr.mxu0 0.0
      %1123 = vmatpush1.msra.mxu0 0.0
      %1124 = vmatprep.subr.mxu0 0.0
      %1125 = vmatpush1.msra.mxu0 0.0
      %1126 = vmatprep.subr.mxu0 0.0
      %1127 = vmatpush1.msra.mxu0 0.0
      %1128 = vmatprep.subr.mxu0 0.0
      %1129 = vmatpush1.msra.mxu0 0.0
      %1130 = vmatprep.subr.mxu0 0.0
      %1131 = vmatpush1.msra.mxu0 0.0
      %1132 = vmatprep.subr.mxu0 0.0
      %1133 = vmatpush1.msra.mxu0 0.0
      %1134 = vmatprep.subr.mxu0 0.0
      %1135 = vmatpush1.msra.mxu0 0.0
      %1136 = vmatprep.subr.mxu0 0.0
      %1137 = vmatpush1.msra.mxu0 0.0
      %1138 = vmatprep.subr.mxu0 0.0
      %1139 = vmatpush1.msra.mxu0 0.0
      %1140 = vmatprep.subr.mxu0 0.0
      %1141 = vmatpush1.msra.mxu0 0.0
      %1142 = vmatprep.subr.mxu0 0.0
      %1143 = vmatpush1.msra.mxu0 0.0
      %1144 = vmatprep.subr.mxu0 0.0
      %1145 = vmatpush1.msra.mxu0 0.0
      %1146 = vmatprep.subr.mxu0 0.0
      %1147 = vmatpush1.msra.mxu0 0.0
      %1148 = vmatprep.subr.mxu0 0.0
      %1149 = vmatpush1.msra.mxu0 0.0
      %1150 = vmatprep.subr.mxu0 0.0
      %1151 = vmatpush1.msra.mxu0 0.0
      %1152 = vmatprep.subr.mxu0 0.0
      %1153 = vmatpush1.msra.mxu0 0.0
      %1154 = vmatprep.subr.mxu0 0.0
      %1155 = vmatpush1.msra.mxu0 0.0
      %1156 = vmatprep.subr.mxu0 0.0
      %1157 = vmatpush1.msra.mxu0 0.0
      %1158 = vmatprep.subr.mxu0 0.0
      %1159 = vmatpush1.msra.mxu0 0.0
      %1160 = vmatprep.subr.mxu0 0.0
      %1161 = vmatpush1.msra.mxu0 0.0
      %1162 = vmatprep.mubr.f32.mxu0 0.0
      %1163 = vmatmul.mubr.f32.gmra.mrb[0].mxu0 %v1093
      %v1164 = vpop.f32.mrb[0].mxu0
      %v1165 = vadd.f32 0.0, %v1164
      %v1166 = vpop.f32.mrb[0].mxu0
      %1167 = vmatprep.mubr.f32.mxu0 0.0
      %1168 = vmatmul.mubr.f32.gmra.mrb[0].mxu0 %v1096
      %v1169 = vpop.f32.mrb[0].mxu0
      %v1170 = vadd.f32 0.0, %v1169
      %v1171 = vpop.f32.mrb[0].mxu0
      %1172 = vdwg.mxu0
      %v1173 = vadd.f32 %v1079, %v1165
      %v1174 = vadd.f32 %v1080, %v1170
      %v1175 = vld [vmem:[#allocation4 + $0x1] sm:$0xff]
      %v1176 = vld [vmem:[#allocation4 + $0x9] sm:$0xff]
      %s1177 = scalar_lea.vmem %s7, 64
      %v1178 = vld [vmem:[%s1177] sm:$0xff]
      %v1179 = vld [vmem:[%s1177 + $0x8] sm:$0xff]
      %v1180 = vld [vmem:[%s1177 + $0x10] sm:$0xff]
      %v1181 = vld [vmem:[%s1177 + $0x18] sm:$0xff]
      %v1182 = vld [vmem:[%s1177 + $0x20] sm:$0xff]
      %v1183 = vld [vmem:[%s1177 + $0x28] sm:$0xff]
      %v1184 = vld [vmem:[%s1177 + $0x30] sm:$0xff]
      %v1185 = vld [vmem:[%s1177 + $0x38] sm:$0xff]
      %v1187 = vsel %vm497, %v1175, 0
      %v1190 = vsel %vm497, %v1176, 0
      %1192 = vmatprep.subr.mxu0 0.0
      %1193 = vmatpush1.msra.mxu0 %v1178
      %1194 = vmatprep.subr.mxu0 0.0
      %1195 = vmatpush1.msra.mxu0 %v1179
      %1196 = vmatprep.subr.mxu0 0.0
      %1197 = vmatpush1.msra.mxu0 %v1180
      %1198 = vmatprep.subr.mxu0 0.0
      %1199 = vmatpush1.msra.mxu0 %v1181
      %1200 = vmatprep.subr.mxu0 0.0
      %1201 = vmatpush1.msra.mxu0 %v1182
      %1202 = vmatprep.subr.mxu0 0.0
      %1203 = vmatpush1.msra.mxu0 %v1183
      %1204 = vmatprep.subr.mxu0 0.0
      %1205 = vmatpush1.msra.mxu0 %v1184
      %1206 = vmatprep.subr.mxu0 0.0
      %1207 = vmatpush1.msra.mxu0 %v1185
      %1208 = vmatprep.subr.mxu0 0.0
      %1209 = vmatpush1.msra.mxu0 0.0
      %1210 = vmatprep.subr.mxu0 0.0
      %1211 = vmatpush1.msra.mxu0 0.0
      %1212 = vmatprep.subr.mxu0 0.0
      %1213 = vmatpush1.msra.mxu0 0.0
      %1214 = vmatprep.subr.mxu0 0.0
      %1215 = vmatpush1.msra.mxu0 0.0
      %1216 = vmatprep.subr.mxu0 0.0
      %1217 = vmatpush1.msra.mxu0 0.0
      %1218 = vmatprep.subr.mxu0 0.0
      %1219 = vmatpush1.msra.mxu0 0.0
      %1220 = vmatprep.subr.mxu0 0.0
      %1221 = vmatpush1.msra.mxu0 0.0
      %1222 = vmatprep.subr.mxu0 0.0
      %1223 = vmatpush1.msra.mxu0 0.0
      %1224 = vmatprep.subr.mxu0 0.0
      %1225 = vmatpush1.msra.mxu0 0.0
      %1226 = vmatprep.subr.mxu0 0.0
      %1227 = vmatpush1.msra.mxu0 0.0
      %1228 = vmatprep.subr.mxu0 0.0
      %1229 = vmatpush1.msra.mxu0 0.0
      %1230 = vmatprep.subr.mxu0 0.0
      %1231 = vmatpush1.msra.mxu0 0.0
      %1232 = vmatprep.subr.mxu0 0.0
      %1233 = vmatpush1.msra.mxu0 0.0
      %1234 = vmatprep.subr.mxu0 0.0
      %1235 = vmatpush1.msra.mxu0 0.0
      %1236 = vmatprep.subr.mxu0 0.0
      %1237 = vmatpush1.msra.mxu0 0.0
      %1238 = vmatprep.subr.mxu0 0.0
      %1239 = vmatpush1.msra.mxu0 0.0
      %1240 = vmatprep.subr.mxu0 0.0
      %1241 = vmatpush1.msra.mxu0 0.0
      %1242 = vmatprep.subr.mxu0 0.0
      %1243 = vmatpush1.msra.mxu0 0.0
      %1244 = vmatprep.subr.mxu0 0.0
      %1245 = vmatpush1.msra.mxu0 0.0
      %1246 = vmatprep.subr.mxu0 0.0
      %1247 = vmatpush1.msra.mxu0 0.0
      %1248 = vmatprep.subr.mxu0 0.0
      %1249 = vmatpush1.msra.mxu0 0.0
      %1250 = vmatprep.subr.mxu0 0.0
      %1251 = vmatpush1.msra.mxu0 0.0
      %1252 = vmatprep.subr.mxu0 0.0
      %1253 = vmatpush1.msra.mxu0 0.0
      %1254 = vmatprep.subr.mxu0 0.0
      %1255 = vmatpush1.msra.mxu0 0.0
      %1256 = vmatprep.mubr.f32.mxu0 0.0
      %1257 = vmatmul.mubr.f32.gmra.mrb[0].mxu0 %v1187
      %v1258 = vpop.f32.mrb[0].mxu0
      %v1259 = vadd.f32 0.0, %v1258
      %v1260 = vpop.f32.mrb[0].mxu0
      %1261 = vmatprep.mubr.f32.mxu0 0.0
      %1262 = vmatmul.mubr.f32.gmra.mrb[0].mxu0 %v1190
      %v1263 = vpop.f32.mrb[0].mxu0
      %v1264 = vadd.f32 0.0, %v1263
      %v1265 = vpop.f32.mrb[0].mxu0
      %1266 = vdwg.mxu0
      %v1267 = vadd.f32 %v1173, %v1259
      %v1268 = vadd.f32 %v1174, %v1264
      %v1269 = vld [vmem:[#allocation3 + $0x2] sm:$0xff]
      %v1270 = vld [vmem:[#allocation3 + $0xa] sm:$0xff]
      %s1271 = scalar_lea.vmem %s6, 128
      %v1272 = vld [vmem:[%s1271] sm:$0xff]
      %v1273 = vld [vmem:[%s1271 + $0x8] sm:$0xff]
      %v1274 = vld [vmem:[%s1271 + $0x10] sm:$0xff]
      %v1275 = vld [vmem:[%s1271 + $0x18] sm:$0xff]
      %v1276 = vld [vmem:[%s1271 + $0x20] sm:$0xff]
      %v1277 = vld [vmem:[%s1271 + $0x28] sm:$0xff]
      %v1278 = vld [vmem:[%s1271 + $0x30] sm:$0xff]
      %v1279 = vld [vmem:[%s1271 + $0x38] sm:$0xff]
      %v1281 = vsel %vm497, %v1269, 0
      %v1284 = vsel %vm497, %v1270, 0
      %1286 = vmatprep.subr.mxu0 0.0
      %1287 = vmatpush1.msra.mxu0 %v1272
      %1288 = vmatprep.subr.mxu0 0.0
      %1289 = vmatpush1.msra.mxu0 %v1273
      %1290 = vmatprep.subr.mxu0 0.0
      %1291 = vmatpush1.msra.mxu0 %v1274
      %1292 = vmatprep.subr.mxu0 0.0
      %1293 = vmatpush1.msra.mxu0 %v1275
      %1294 = vmatprep.subr.mxu0 0.0
      %1295 = vmatpush1.msra.mxu0 %v1276
      %1296 = vmatprep.subr.mxu0 0.0
      %1297 = vmatpush1.msra.mxu0 %v1277
      %1298 = vmatprep.subr.mxu0 0.0
      %1299 = vmatpush1.msra.mxu0 %v1278
      %1300 = vmatprep.subr.mxu0 0.0
      %1301 = vmatpush1.msra.mxu0 %v1279
      %1302 = vmatprep.subr.mxu0 0.0
      %1303 = vmatpush1.msra.mxu0 0.0
      %1304 = vmatprep.subr.mxu0 0.0
      %1305 = vmatpush1.msra.mxu0 0.0
      %1306 = vmatprep.subr.mxu0 0.0
      %1307 = vmatpush1.msra.mxu0 0.0
      %1308 = vmatprep.subr.mxu0 0.0
      %1309 = vmatpush1.msra.mxu0 0.0
      %1310 = vmatprep.subr.mxu0 0.0
      %1311 = vmatpush1.msra.mxu0 0.0
      %1312 = vmatprep.subr.mxu0 0.0
      %1313 = vmatpush1.msra.mxu0 0.0
      %1314 = vmatprep.subr.mxu0 0.0
      %1315 = vmatpush1.msra.mxu0 0.0
      %1316 = vmatprep.subr.mxu0 0.0
      %1317 = vmatpush1.msra.mxu0 0.0
      %1318 = vmatprep.subr.mxu0 0.0
      %1319 = vmatpush1.msra.mxu0 0.0
      %1320 = vmatprep.subr.mxu0 0.0
      %1321 = vmatpush1.msra.mxu0 0.0
      %1322 = vmatprep.subr.mxu0 0.0
      %1323 = vmatpush1.msra.mxu0 0.0
      %1324 = vmatprep.subr.mxu0 0.0
      %1325 = vmatpush1.msra.mxu0 0.0
      %1326 = vmatprep.subr.mxu0 0.0
      %1327 = vmatpush1.msra.mxu0 0.0
      %1328 = vmatprep.subr.mxu0 0.0
      %1329 = vmatpush1.msra.mxu0 0.0
      %1330 = vmatprep.subr.mxu0 0.0
      %1331 = vmatpush1.msra.mxu0 0.0
      %1332 = vmatprep.subr.mxu0 0.0
      %1333 = vmatpush1.msra.mxu0 0.0
      %1334 = vmatprep.subr.mxu0 0.0
      %1335 = vmatpush1.msra.mxu0 0.0
      %1336 = vmatprep.subr.mxu0 0.0
      %1337 = vmatpush1.msra.mxu0 0.0
      %1338 = vmatprep.subr.mxu0 0.0
      %1339 = vmatpush1.msra.mxu0 0.0
      %1340 = vmatprep.subr.mxu0 0.0
      %1341 = vmatpush1.msra.mxu0 0.0
      %1342 = vmatprep.subr.mxu0 0.0
      %1343 = vmatpush1.msra.mxu0 0.0
      %1344 = vmatprep.subr.mxu0 0.0
      %1345 = vmatpush1.msra.mxu0 0.0
      %1346 = vmatprep.subr.mxu0 0.0
      %1347 = vmatpush1.msra.mxu0 0.0
      %1348 = vmatprep.subr.mxu0 0.0
      %1349 = vmatpush1.msra.mxu0 0.0
      %1350 = vmatprep.mubr.f32.mxu0 0.0
      %1351 = vmatmul.mubr.f32.gmra.mrb[0].mxu0 %v1281
      %v1352 = vpop.f32.mrb[0].mxu0
      %v1353 = vadd.f32 0.0, %v1352
      %v1354 = vpop.f32.mrb[0].mxu0
      %1355 = vmatprep.mubr.f32.mxu0 0.0
      %1356 = vmatmul.mubr.f32.gmra.mrb[0].mxu0 %v1284
      %v1357 = vpop.f32.mrb[0].mxu0
      %v1358 = vadd.f32 0.0, %v1357
      %v1359 = vpop.f32.mrb[0].mxu0
      %1360 = vdwg.mxu0
      %v1361 = vadd.f32 %v1267, %v1353
      %v1362 = vadd.f32 %v1268, %v1358
      %v1363 = vld [vmem:[#allocation4 + $0x2] sm:$0xff]
      %v1364 = vld [vmem:[#allocation4 + $0xa] sm:$0xff]
      %s1365 = scalar_lea.vmem %s7, 128
      %v1366 = vld [vmem:[%s1365] sm:$0xff]
      %v1367 = vld [vmem:[%s1365 + $0x8] sm:$0xff]
      %v1368 = vld [vmem:[%s1365 + $0x10] sm:$0xff]
      %v1369 = vld [vmem:[%s1365 + $0x18] sm:$0xff]
      %v1370 = vld [vmem:[%s1365 + $0x20] sm:$0xff]
      %v1371 = vld [vmem:[%s1365 + $0x28] sm:$0xff]
      %v1372 = vld [vmem:[%s1365 + $0x30] sm:$0xff]
      %v1373 = vld [vmem:[%s1365 + $0x38] sm:$0xff]
      %v1375 = vsel %vm497, %v1363, 0
      %v1378 = vsel %vm497, %v1364, 0
      %1380 = vmatprep.subr.mxu0 0.0
      %1381 = vmatpush1.msra.mxu0 %v1366
      %1382 = vmatprep.subr.mxu0 0.0
      %1383 = vmatpush1.msra.mxu0 %v1367
      %1384 = vmatprep.subr.mxu0 0.0
      %1385 = vmatpush1.msra.mxu0 %v1368
      %1386 = vmatprep.subr.mxu0 0.0
      %1387 = vmatpush1.msra.mxu0 %v1369
      %1388 = vmatprep.subr.mxu0 0.0
      %1389 = vmatpush1.msra.mxu0 %v1370
      %1390 = vmatprep.subr.mxu0 0.0
      %1391 = vmatpush1.msra.mxu0 %v1371
      %1392 = vmatprep.subr.mxu0 0.0
      %1393 = vmatpush1.msra.mxu0 %v1372
      %1394 = vmatprep.subr.mxu0 0.0
      %1395 = vmatpush1.msra.mxu0 %v1373
      %1396 = vmatprep.subr.mxu0 0.0
      %1397 = vmatpush1.msra.mxu0 0.0
      %1398 = vmatprep.subr.mxu0 0.0
      %1399 = vmatpush1.msra.mxu0 0.0
      %1400 = vmatprep.subr.mxu0 0.0
      %1401 = vmatpush1.msra.mxu0 0.0
      %1402 = vmatprep.subr.mxu0 0.0
      %1403 = vmatpush1.msra.mxu0 0.0
      %1404 = vmatprep.subr.mxu0 0.0
      %1405 = vmatpush1.msra.mxu0 0.0
      %1406 = vmatprep.subr.mxu0 0.0
      %1407 = vmatpush1.msra.mxu0 0.0
      %1408 = vmatprep.subr.mxu0 0.0
      %1409 = vmatpush1.msra.mxu0 0.0
      %1410 = vmatprep.subr.mxu0 0.0
      %1411 = vmatpush1.msra.mxu0 0.0
      %1412 = vmatprep.subr.mxu0 0.0
      %1413 = vmatpush1.msra.mxu0 0.0
      %1414 = vmatprep.subr.mxu0 0.0
      %1415 = vmatpush1.msra.mxu0 0.0
      %1416 = vmatprep.subr.mxu0 0.0
      %1417 = vmatpush1.msra.mxu0 0.0
      %1418 = vmatprep.subr.mxu0 0.0
      %1419 = vmatpush1.msra.mxu0 0.0
      %1420 = vmatprep.subr.mxu0 0.0
      %1421 = vmatpush1.msra.mxu0 0.0
      %1422 = vmatprep.subr.mxu0 0.0
      %1423 = vmatpush1.msra.mxu0 0.0
      %1424 = vmatprep.subr.mxu0 0.0
      %1425 = vmatpush1.msra.mxu0 0.0
      %1426 = vmatprep.subr.mxu0 0.0
      %1427 = vmatpush1.msra.mxu0 0.0
      %1428 = vmatprep.subr.mxu0 0.0
      %1429 = vmatpush1.msra.mxu0 0.0
      %1430 = vmatprep.subr.mxu0 0.0
      %1431 = vmatpush1.msra.mxu0 0.0
      %1432 = vmatprep.subr.mxu0 0.0
      %1433 = vmatpush1.msra.mxu0 0.0
      %1434 = vmatprep.subr.mxu0 0.0
      %1435 = vmatpush1.msra.mxu0 0.0
      %1436 = vmatprep.subr.mxu0 0.0
      %1437 = vmatpush1.msra.mxu0 0.0
      %1438 = vmatprep.subr.mxu0 0.0
      %1439 = vmatpush1.msra.mxu0 0.0
      %1440 = vmatprep.subr.mxu0 0.0
      %1441 = vmatpush1.msra.mxu0 0.0
      %1442 = vmatprep.subr.mxu0 0.0
      %1443 = vmatpush1.msra.mxu0 0.0
      %1444 = vmatprep.mubr.f32.mxu0 0.0
      %1445 = vmatmul.mubr.f32.gmra.mrb[0].mxu0 %v1375
      %v1446 = vpop.f32.mrb[0].mxu0
      %v1447 = vadd.f32 0.0, %v1446
      %v1448 = vpop.f32.mrb[0].mxu0
      %1449 = vmatprep.mubr.f32.mxu0 0.0
      %1450 = vmatmul.mubr.f32.gmra.mrb[0].mxu0 %v1378
      %v1451 = vpop.f32.mrb[0].mxu0
      %v1452 = vadd.f32 0.0, %v1451
      %v1453 = vpop.f32.mrb[0].mxu0
      %1454 = vdwg.mxu0
      %v1455 = vadd.f32 %v1361, %v1447
      %v1456 = vadd.f32 %v1362, %v1452
      %v1457 = vmul.f32 %v1455, 0.1
      %v1458 = vmul.f32 %v1456, 0.1
      %v1459 = vmax.f32 %v1455, %v1457
      %v1460 = vmax.f32 %v1456, %v1458
      %1461 = vst.msk [vmem:[#allocation5] sm:$0x1] %vm877, 0.0
      %1462 = vst.msk [vmem:[#allocation5 + $0x11] sm:$0x1] %vm877, 0.0
      %1463 = vst.msk [vmem:[#allocation5 + $0x1] sm:$0xff] %vm497, %v1459
      %1464 = vst.msk [vmem:[#allocation5 + $0x9] sm:$0xff] %vm497, %v1460
      %v1465 = vld [vmem:[%s10] sm:$0x1]
      %v1467 = vlaneseq
      %v1468 = vshrl.u32 %v1467, 7
      %v1469 = vsub.s32 0, %v1468
      %v1470 = vrot.slane %v1465, %v1469
      %v1472 = vld [vmem:[#allocation5] sm:$0xff]
      %v1473 = vld [vmem:[#allocation5 + $0x8] sm:$0xff]
      %v1474 = vld [vmem:[%s9] sm:$0xff]
      %v1475 = vld [vmem:[%s9 + $0x8] sm:$0xff]
      %v1476 = vld [vmem:[%s9 + $0x10] sm:$0xff]
      %v1477 = vld [vmem:[%s9 + $0x18] sm:$0xff]
      %v1478 = vld [vmem:[%s9 + $0x20] sm:$0xff]
      %v1479 = vld [vmem:[%s9 + $0x28] sm:$0xff]
      %v1480 = vld [vmem:[%s9 + $0x30] sm:$0xff]
      %v1481 = vld [vmem:[%s9 + $0x38] sm:$0xff]
      %v1483 = vsel %vm497, %v1472, 0
      %v1486 = vsel %vm497, %v1473, 0
      %1488 = vmatprep.subr.mxu0 0.0
      %1489 = vmatpush1.msra.mxu0 %v1474
      %1490 = vmatprep.subr.mxu0 0.0
      %1491 = vmatpush1.msra.mxu0 %v1475
      %1492 = vmatprep.subr.mxu0 0.0
      %1493 = vmatpush1.msra.mxu0 %v1476
      %1494 = vmatprep.subr.mxu0 0.0
      %1495 = vmatpush1.msra.mxu0 %v1477
      %1496 = vmatprep.subr.mxu0 0.0
      %1497 = vmatpush1.msra.mxu0 %v1478
      %1498 = vmatprep.subr.mxu0 0.0
      %1499 = vmatpush1.msra.mxu0 %v1479
      %1500 = vmatprep.subr.mxu0 0.0
      %1501 = vmatpush1.msra.mxu0 %v1480
      %1502 = vmatprep.subr.mxu0 0.0
      %1503 = vmatpush1.msra.mxu0 %v1481
      %1504 = vmatprep.subr.mxu0 0.0
      %1505 = vmatpush1.msra.mxu0 0.0
      %1506 = vmatprep.subr.mxu0 0.0
      %1507 = vmatpush1.msra.mxu0 0.0
      %1508 = vmatprep.subr.mxu0 0.0
      %1509 = vmatpush1.msra.mxu0 0.0
      %1510 = vmatprep.subr.mxu0 0.0
      %1511 = vmatpush1.msra.mxu0 0.0
      %1512 = vmatprep.subr.mxu0 0.0
      %1513 = vmatpush1.msra.mxu0 0.0
      %1514 = vmatprep.subr.mxu0 0.0
      %1515 = vmatpush1.msra.mxu0 0.0
      %1516 = vmatprep.subr.mxu0 0.0
      %1517 = vmatpush1.msra.mxu0 0.0
      %1518 = vmatprep.subr.mxu0 0.0
      %1519 = vmatpush1.msra.mxu0 0.0
      %1520 = vmatprep.subr.mxu0 0.0
      %1521 = vmatpush1.msra.mxu0 0.0
      %1522 = vmatprep.subr.mxu0 0.0
      %1523 = vmatpush1.msra.mxu0 0.0
      %1524 = vmatprep.subr.mxu0 0.0
      %1525 = vmatpush1.msra.mxu0 0.0
      %1526 = vmatprep.subr.mxu0 0.0
      %1527 = vmatpush1.msra.mxu0 0.0
      %1528 = vmatprep.subr.mxu0 0.0
      %1529 = vmatpush1.msra.mxu0 0.0
      %1530 = vmatprep.subr.mxu0 0.0
      %1531 = vmatpush1.msra.mxu0 0.0
      %1532 = vmatprep.subr.mxu0 0.0
      %1533 = vmatpush1.msra.mxu0 0.0
      %1534 = vmatprep.subr.mxu0 0.0
      %1535 = vmatpush1.msra.mxu0 0.0
      %1536 = vmatprep.subr.mxu0 0.0
      %1537 = vmatpush1.msra.mxu0 0.0
      %1538 = vmatprep.subr.mxu0 0.0
      %1539 = vmatpush1.msra.mxu0 0.0
      %1540 = vmatprep.subr.mxu0 0.0
      %1541 = vmatpush1.msra.mxu0 0.0
      %1542 = vmatprep.subr.mxu0 0.0
      %1543 = vmatpush1.msra.mxu0 0.0
      %1544 = vmatprep.subr.mxu0 0.0
      %1545 = vmatpush1.msra.mxu0 0.0
      %1546 = vmatprep.subr.mxu0 0.0
      %1547 = vmatpush1.msra.mxu0 0.0
      %1548 = vmatprep.subr.mxu0 0.0
      %1549 = vmatpush1.msra.mxu0 0.0
      %1550 = vmatprep.subr.mxu0 0.0
      %1551 = vmatpush1.msra.mxu0 0.0
      %1552 = vmatprep.mubr.f32.mxu0 0.0
      %1553 = vmatmul.mubr.f32.gmra.mrb[0].mxu0 %v1483
      %v1554 = vpop.f32.mrb[0].mxu0
      %v1555 = vadd.f32 0.0, %v1554
      %v1556 = vpop.f32.mrb[0].mxu0
      %1557 = vmatprep.mubr.f32.mxu0 0.0
      %1558 = vmatmul.mubr.f32.gmra.mrb[0].mxu0 %v1486
      %v1559 = vpop.f32.mrb[0].mxu0
      %v1560 = vadd.f32 0.0, %v1559
      %v1561 = vpop.f32.mrb[0].mxu0
      %1562 = vdwg.mxu0
      %v1563 = vadd.f32 %v1470, %v1555
      %v1564 = vadd.f32 %v1470, %v1560
      %v1565 = vld [vmem:[#allocation5 + $0x1] sm:$0xff]
      %v1566 = vld [vmem:[#allocation5 + $0x9] sm:$0xff]
      %s1567 = scalar_lea.vmem %s9, 64
      %v1568 = vld [vmem:[%s1567] sm:$0xff]
      %v1569 = vld [vmem:[%s1567 + $0x8] sm:$0xff]
      %v1570 = vld [vmem:[%s1567 + $0x10] sm:$0xff]
      %v1571 = vld [vmem:[%s1567 + $0x18] sm:$0xff]
      %v1572 = vld [vmem:[%s1567 + $0x20] sm:$0xff]
      %v1573 = vld [vmem:[%s1567 + $0x28] sm:$0xff]
      %v1574 = vld [vmem:[%s1567 + $0x30] sm:$0xff]
      %v1575 = vld [vmem:[%s1567 + $0x38] sm:$0xff]
      %v1577 = vsel %vm497, %v1565, 0
      %v1580 = vsel %vm497, %v1566, 0
      %1582 = vmatprep.subr.mxu0 0.0
      %1583 = vmatpush1.msra.mxu0 %v1568
      %1584 = vmatprep.subr.mxu0 0.0
      %1585 = vmatpush1.msra.mxu0 %v1569
      %1586 = vmatprep.subr.mxu0 0.0
      %1587 = vmatpush1.msra.mxu0 %v1570
      %1588 = vmatprep.subr.mxu0 0.0
      %1589 = vmatpush1.msra.mxu0 %v1571
      %1590 = vmatprep.subr.mxu0 0.0
      %1591 = vmatpush1.msra.mxu0 %v1572
      %1592 = vmatprep.subr.mxu0 0.0
      %1593 = vmatpush1.msra.mxu0 %v1573
      %1594 = vmatprep.subr.mxu0 0.0
      %1595 = vmatpush1.msra.mxu0 %v1574
      %1596 = vmatprep.subr.mxu0 0.0
      %1597 = vmatpush1.msra.mxu0 %v1575
      %1598 = vmatprep.subr.mxu0 0.0
      %1599 = vmatpush1.msra.mxu0 0.0
      %1600 = vmatprep.subr.mxu0 0.0
      %1601 = vmatpush1.msra.mxu0 0.0
      %1602 = vmatprep.subr.mxu0 0.0
      %1603 = vmatpush1.msra.mxu0 0.0
      %1604 = vmatprep.subr.mxu0 0.0
      %1605 = vmatpush1.msra.mxu0 0.0
      %1606 = vmatprep.subr.mxu0 0.0
      %1607 = vmatpush1.msra.mxu0 0.0
      %1608 = vmatprep.subr.mxu0 0.0
      %1609 = vmatpush1.msra.mxu0 0.0
      %1610 = vmatprep.subr.mxu0 0.0
      %1611 = vmatpush1.msra.mxu0 0.0
      %1612 = vmatprep.subr.mxu0 0.0
      %1613 = vmatpush1.msra.mxu0 0.0
      %1614 = vmatprep.subr.mxu0 0.0
      %1615 = vmatpush1.msra.mxu0 0.0
      %1616 = vmatprep.subr.mxu0 0.0
      %1617 = vmatpush1.msra.mxu0 0.0
      %1618 = vmatprep.subr.mxu0 0.0
      %1619 = vmatpush1.msra.mxu0 0.0
      %1620 = vmatprep.subr.mxu0 0.0
      %1621 = vmatpush1.msra.mxu0 0.0
      %1622 = vmatprep.subr.mxu0 0.0
      %1623 = vmatpush1.msra.mxu0 0.0
      %1624 = vmatprep.subr.mxu0 0.0
      %1625 = vmatpush1.msra.mxu0 0.0
      %1626 = vmatprep.subr.mxu0 0.0
      %1627 = vmatpush1.msra.mxu0 0.0
      %1628 = vmatprep.subr.mxu0 0.0
      %1629 = vmatpush1.msra.mxu0 0.0
      %1630 = vmatprep.subr.mxu0 0.0
      %1631 = vmatpush1.msra.mxu0 0.0
      %1632 = vmatprep.subr.mxu0 0.0
      %1633 = vmatpush1.msra.mxu0 0.0
      %1634 = vmatprep.subr.mxu0 0.0
      %1635 = vmatpush1.msra.mxu0 0.0
      %1636 = vmatprep.subr.mxu0 0.0
      %1637 = vmatpush1.msra.mxu0 0.0
      %1638 = vmatprep.subr.mxu0 0.0
      %1639 = vmatpush1.msra.mxu0 0.0
      %1640 = vmatprep.subr.mxu0 0.0
      %1641 = vmatpush1.msra.mxu0 0.0
      %1642 = vmatprep.subr.mxu0 0.0
      %1643 = vmatpush1.msra.mxu0 0.0
      %1644 = vmatprep.subr.mxu0 0.0
      %1645 = vmatpush1.msra.mxu0 0.0
      %1646 = vmatprep.mubr.f32.mxu0 0.0
      %1647 = vmatmul.mubr.f32.gmra.mrb[0].mxu0 %v1577
      %v1648 = vpop.f32.mrb[0].mxu0
      %v1649 = vadd.f32 0.0, %v1648
      %v1650 = vpop.f32.mrb[0].mxu0
      %1651 = vmatprep.mubr.f32.mxu0 0.0
      %1652 = vmatmul.mubr.f32.gmra.mrb[0].mxu0 %v1580
      %v1653 = vpop.f32.mrb[0].mxu0
      %v1654 = vadd.f32 0.0, %v1653
      %v1655 = vpop.f32.mrb[0].mxu0
      %1656 = vdwg.mxu0
      %v1657 = vadd.f32 %v1563, %v1649
      %v1658 = vadd.f32 %v1564, %v1654
      %v1659 = vld [vmem:[#allocation5 + $0x2] sm:$0xff]
      %v1660 = vld [vmem:[#allocation5 + $0xa] sm:$0xff]
      %s1661 = scalar_lea.vmem %s9, 128
      %v1662 = vld [vmem:[%s1661] sm:$0xff]
      %v1663 = vld [vmem:[%s1661 + $0x8] sm:$0xff]
      %v1664 = vld [vmem:[%s1661 + $0x10] sm:$0xff]
      %v1665 = vld [vmem:[%s1661 + $0x18] sm:$0xff]
      %v1666 = vld [vmem:[%s1661 + $0x20] sm:$0xff]
      %v1667 = vld [vmem:[%s1661 + $0x28] sm:$0xff]
      %v1668 = vld [vmem:[%s1661 + $0x30] sm:$0xff]
      %v1669 = vld [vmem:[%s1661 + $0x38] sm:$0xff]
      %v1671 = vsel %vm497, %v1659, 0
      %v1674 = vsel %vm497, %v1660, 0
      %1676 = vmatprep.subr.mxu0 0.0
      %1677 = vmatpush1.msra.mxu0 %v1662
      %1678 = vmatprep.subr.mxu0 0.0
      %1679 = vmatpush1.msra.mxu0 %v1663
      %1680 = vmatprep.subr.mxu0 0.0
      %1681 = vmatpush1.msra.mxu0 %v1664
      %1682 = vmatprep.subr.mxu0 0.0
      %1683 = vmatpush1.msra.mxu0 %v1665
      %1684 = vmatprep.subr.mxu0 0.0
      %1685 = vmatpush1.msra.mxu0 %v1666
      %1686 = vmatprep.subr.mxu0 0.0
      %1687 = vmatpush1.msra.mxu0 %v1667
      %1688 = vmatprep.subr.mxu0 0.0
      %1689 = vmatpush1.msra.mxu0 %v1668
      %1690 = vmatprep.subr.mxu0 0.0
      %1691 = vmatpush1.msra.mxu0 %v1669
      %1692 = vmatprep.subr.mxu0 0.0
      %1693 = vmatpush1.msra.mxu0 0.0
      %1694 = vmatprep.subr.mxu0 0.0
      %1695 = vmatpush1.msra.mxu0 0.0
      %1696 = vmatprep.subr.mxu0 0.0
      %1697 = vmatpush1.msra.mxu0 0.0
      %1698 = vmatprep.subr.mxu0 0.0
      %1699 = vmatpush1.msra.mxu0 0.0
      %1700 = vmatprep.subr.mxu0 0.0
      %1701 = vmatpush1.msra.mxu0 0.0
      %1702 = vmatprep.subr.mxu0 0.0
      %1703 = vmatpush1.msra.mxu0 0.0
      %1704 = vmatprep.subr.mxu0 0.0
      %1705 = vmatpush1.msra.mxu0 0.0
      %1706 = vmatprep.subr.mxu0 0.0
      %1707 = vmatpush1.msra.mxu0 0.0
      %1708 = vmatprep.subr.mxu0 0.0
      %1709 = vmatpush1.msra.mxu0 0.0
      %1710 = vmatprep.subr.mxu0 0.0
      %1711 = vmatpush1.msra.mxu0 0.0
      %1712 = vmatprep.subr.mxu0 0.0
      %1713 = vmatpush1.msra.mxu0 0.0
      %1714 = vmatprep.subr.mxu0 0.0
      %1715 = vmatpush1.msra.mxu0 0.0
      %1716 = vmatprep.subr.mxu0 0.0
      %1717 = vmatpush1.msra.mxu0 0.0
      %1718 = vmatprep.subr.mxu0 0.0
      %1719 = vmatpush1.msra.mxu0 0.0
      %1720 = vmatprep.subr.mxu0 0.0
      %1721 = vmatpush1.msra.mxu0 0.0
      %1722 = vmatprep.subr.mxu0 0.0
      %1723 = vmatpush1.msra.mxu0 0.0
      %1724 = vmatprep.subr.mxu0 0.0
      %1725 = vmatpush1.msra.mxu0 0.0
      %1726 = vmatprep.subr.mxu0 0.0
      %1727 = vmatpush1.msra.mxu0 0.0
      %1728 = vmatprep.subr.mxu0 0.0
      %1729 = vmatpush1.msra.mxu0 0.0
      %1730 = vmatprep.subr.mxu0 0.0
      %1731 = vmatpush1.msra.mxu0 0.0
      %1732 = vmatprep.subr.mxu0 0.0
      %1733 = vmatpush1.msra.mxu0 0.0
      %1734 = vmatprep.subr.mxu0 0.0
      %1735 = vmatpush1.msra.mxu0 0.0
      %1736 = vmatprep.subr.mxu0 0.0
      %1737 = vmatpush1.msra.mxu0 0.0
      %1738 = vmatprep.subr.mxu0 0.0
      %1739 = vmatpush1.msra.mxu0 0.0
      %1740 = vmatprep.mubr.f32.mxu0 0.0
      %1741 = vmatmul.mubr.f32.gmra.mrb[0].mxu0 %v1671
      %v1742 = vpop.f32.mrb[0].mxu0
      %v1743 = vadd.f32 0.0, %v1742
      %v1744 = vpop.f32.mrb[0].mxu0
      %1745 = vmatprep.mubr.f32.mxu0 0.0
      %1746 = vmatmul.mubr.f32.gmra.mrb[0].mxu0 %v1674
      %v1747 = vpop.f32.mrb[0].mxu0
      %v1748 = vadd.f32 0.0, %v1747
      %v1749 = vpop.f32.mrb[0].mxu0
      %1750 = vdwg.mxu0
      %v1751 = vadd.f32 %v1657, %v1743
      %v1752 = vadd.f32 %v1658, %v1748
      %v1753 = vmul.f32 %v1751, 0.1
      %v1754 = vmul.f32 %v1752, 0.1
      %v1755 = vmax.f32 %v1751, %v1753
      %v1756 = vmax.f32 %v1752, %v1754
      %1757 = vst.msk [vmem:[%s403] sm:$0xff] %vm497, %v1755
      %1758 = vst.msk [vmem:[%s403 + $0x8] sm:$0xff] %vm497, %v1756
      %p1759 = scmp.lt.s32.totalorder %s22, 1
      %s1760 = scalar_select %p1759, %s22, 1
      %s1761 = smul.addr %s1760, 2
      %s1762 = smul.addr %s1761, 8
      %s1763 = scalar_lea.vmem %s11, %s1762
      // Predicated region
      $region65: #{unet_up_block_forward.1} parent=63 // pred_check
        %p1764 = pneg %p281
      $region66: #{unet_up_block_forward.1} parent=63 // pred_check_branch
        %1766 = sbr.rel (%p1764) target = $region68
      $region67: #{unet_up_block_forward.1} parent=63 // pred_region
        _
      $region68: #{unet_up_block_forward.1} parent=63 // pred_fallthru
        _
    $region64: #{unet_up_block_forward.1} parent=5 // pred_fallthru
      _
    %p1767 = scmp.le.s32.totalorder 2, %s17
    // Predicated region
    $region69: #{unet_up_block_forward.1} parent=5 // pred_check
      %p1768 = pneg %p1767
    $region70: #{unet_up_block_forward.1} parent=5 // pred_check_branch
      %1770 = sbr.rel (%p1768) target = $region72
    $region71: #{unet_up_block_forward.1} parent=5 // pred_region
      %s1771 = ssub.s32 %s17, 2
      // Predicated region
      $region73: #{unet_up_block_forward.1} parent=71 // pred_check
        %p1772 = pneg %p287
      $region74: #{unet_up_block_forward.1} parent=71 // pred_check_branch
        %1774 = sbr.rel (%p1772) target = $region76
      $region75: #{unet_up_block_forward.1} parent=71 // pred_region
        %p1775 = scmp.lt.s32.totalorder %s23, 1
        %s1776 = scalar_select %p1775, %s23, 1
        %s1777 = smul.addr %s1776, 2
        %s1778 = smul.addr %s1777, 8
        %s1779 = scalar_lea.vmem %s11, %s1778
      $region76: #{unet_up_block_forward.1} parent=71 // pred_fallthru
        _
    $region72: #{unet_up_block_forward.1} parent=5 // pred_fallthru
      _
  $region6: #{unet_up_block_forward.1} parent=0 // loop_footer
    %s21 = sadd.s32 1, %s17
  $region7: #{unet_up_block_forward.1} parent=0 // loop_footer_branch
    %16 = sbr.rel target = $region3
  $region8: #{unet_up_block_forward.1} parent=0 // loop_exit
    _

</llo_original>
